<compile_context>
chip_gen: v7x
topology: tpu7x:2x2x1
jax: 0.10.0
libtpu: 0.0.40
codegen_flags: <defaults>
</compile_context>

<pallas_src>
import math

import jax
import jax.numpy as jnp
import numpy as np
from jax.experimental import pallas as pl
from jax.experimental.pallas import tpu as pltpu


def _round_up(v, m):
    return ((v + m - 1) // m) * m


def _pick_time_chunk(T, cap=8):
    """Largest divisor of T that is <= cap (bounds per-chunk unroll)."""
    for c in range(min(T, cap), 0, -1):
        if T % c == 0:
            return c
    return T


# ---------------------------------------------------------------------------
# Kernel.
# Grid = (batch_tiles [parallel], time_chunks [arbitrary]).
# Gate axes are packed at width 4*Hg (Hg = round_up(H, 32), lane-dense block);
# batch is padded to a sublane-dense tile; classes to Cp (lane-dense store).
# h/c for the forward direction live in VMEM scratch across time chunks.
# ---------------------------------------------------------------------------
def elmo_bilstm_kernel(xw_f_ref,                 # (Tc, TB, 4Hg) f32: x@W_ih + bias (fwd), time-major
                       xw_b_ref,                 # (TB, 4Hg) f32: x[T-1]@W_ih + bias (bwd)
                       whh_f_ref, whh_b_ref,     # (Hg, 4Hg) bf16
                       h0f_ref, c0f_ref,         # (TB, Hg) f32
                       h0b_ref, c0b_ref,         # (TB, Hg) f32
                       wfc_f_ref, wfc_b_ref,     # (Hg, Cp) bf16  (fc weight split fwd/bwd)
                       bfc_ref,                  # (1, Cp) f32
                       out_ref,                  # (TB, Cp) f32
                       hf_sc, cf_sc):            # (TB, Hg) f32 VMEM scratch (chunk carry)
    t_chunk = pl.program_id(1)
    n_chunks = pl.num_programs(1)
    Tc = xw_f_ref.shape[0]
    Hg = h0f_ref.shape[1]

    # ---- init forward carry at the first time chunk of this batch tile -----
    @pl.when(t_chunk == 0)
    def _():
        hf_sc[...] = h0f_ref[...]
        cf_sc[...] = c0f_ref[...]

    # Hoist recurrent weight load out of the loop.
    whh_f = whh_f_ref[...]

    def cell(pre_gates, h, c, whh):
        # pre_gates already contains x_t @ W_ih + (b_ih + b_hh), in f32.
        # bf16 x bf16 -> f32: native single-pass MXU matmul.
        gates = pre_gates + jnp.dot(h.astype(jnp.bfloat16), whh,
                                    preferred_element_type=jnp.float32)
        i = jax.nn.sigmoid(gates[:, 0 * Hg:1 * Hg])
        f = jax.nn.sigmoid(gates[:, 1 * Hg:2 * Hg])
        g = jnp.tanh(gates[:, 2 * Hg:3 * Hg])
        o = jax.nn.sigmoid(gates[:, 3 * Hg:4 * Hg])
        c_new = f * c + i * g
        h_new = o * jnp.tanh(c_new)
        return h_new, c_new

    # ---- forward direction: this chunk's recurrence, bounded unroll --------
    def body(t, carry):
        h, c = carry
        return cell(xw_f_ref[t], h, c, whh_f)

    h_f, c_f = jax.lax.fori_loop(0, Tc, body,
                                 (hf_sc[...], cf_sc[...]),
                                 unroll=True)
    hf_sc[...] = h_f
    cf_sc[...] = c_f

    # ---- last chunk: one exact backward step + FC ---------------------------
    # PyTorch's bidirectional LSTM emits, at time index T-1, the backward-
    # direction state obtained after processing only x[T-1] from (h0_b, c0_b).
    # Since the module only uses out[:, -1], a single backward step is exact.
    @pl.when(t_chunk == n_chunks - 1)
    def _():
        h_bwd, _ = cell(xw_b_ref[...], h0b_ref[...], c0b_ref[...],
                        whh_b_ref[...])
        out_ref[...] = (
            jnp.dot(h_f.astype(jnp.bfloat16), wfc_f_ref[...],
                    preferred_element_type=jnp.float32)
            + jnp.dot(h_bwd.astype(jnp.bfloat16), wfc_b_ref[...],
                      preferred_element_type=jnp.float32)
            + bfc_ref[...])


# ---------------------------------------------------------------------------
# Wrapper: padding to hardware-friendly shapes, hoisted input projection,
# (batch, time-chunk) tiled pallas_call.
# ---------------------------------------------------------------------------
def _pad_gate_cols(w, H, Hg):
    """Pad a gate-blocked (K, 4H) array to (K, 4Hg), zero-filling each gate."""
    if Hg == H:
        return w
    K = w.shape[0]
    w4 = w.reshape(K, 4, H)
    w4 = jnp.pad(w4, ((0, 0), (0, 0), (0, Hg - H)))
    return w4.reshape(K, 4 * Hg)


def elmo_bilstm_forward(embeddings, params):
    """embeddings: (B, T, E) float32 (batch_first, like torch LSTM input)."""
    B, T, E = embeddings.shape
    H = params["h0"].shape[-1]
    C = params["w_fc"].shape[-1]

    Hg = _round_up(H, 32)         # 4*Hg is a multiple of 128 -> lane-dense gates
    Cp = _round_up(C, 128)        # lane-dense logits store
    nG = 4 * Hg

    # Batch tiling: sublane-dense, cap 256 (v6e MXU rows), >=2 tiles when the
    # batch allows it so the "parallel" axis shards across v7x's two TCs.
    B8 = _round_up(B, 8)
    if B8 <= 8:
        TB = B8
    else:
        TB = min(_round_up((B8 + 1) // 2, 8), 256)
    Bp = _round_up(B8, TB)

    # Time chunking: trailing "arbitrary" grid axis, bounded unroll per chunk.
    Tc = _pick_time_chunk(T, cap=8)
    n_tc = T // Tc

    # -- pad inputs / parameters (zero padding is exact; see header) ----------
    x = jnp.pad(embeddings, ((0, Bp - B), (0, 0), (0, 0)))           # (Bp, T, E)

    w_ih_f = _pad_gate_cols(params["w_ih_f"], H, Hg)                 # (E, 4Hg)
    w_ih_b = _pad_gate_cols(params["w_ih_b"], H, Hg)
    w_hh_f = jnp.pad(_pad_gate_cols(params["w_hh_f"], H, Hg),
                     ((0, Hg - H), (0, 0))).astype(jnp.bfloat16)     # (Hg, 4Hg)
    w_hh_b = jnp.pad(_pad_gate_cols(params["w_hh_b"], H, Hg),
                     ((0, Hg - H), (0, 0))).astype(jnp.bfloat16)
    b_f = _pad_gate_cols(params["b_f"], H, Hg)                       # (1, 4Hg)
    b_b = _pad_gate_cols(params["b_b"], H, Hg)

    def pad_state(s):                                                # (B,H)->(Bp,Hg)
        return jnp.pad(s, ((0, Bp - B), (0, Hg - H)))

    h0f, c0f = pad_state(params["h0"][0]), pad_state(params["c0"][0])
    h0b, c0b = pad_state(params["h0"][1]), pad_state(params["c0"][1])

    wfc_f = jnp.pad(params["w_fc"][:H],
                    ((0, Hg - H), (0, Cp - C))).astype(jnp.bfloat16)  # (Hg, Cp)
    wfc_b = jnp.pad(params["w_fc"][H:],
                    ((0, Hg - H), (0, Cp - C))).astype(jnp.bfloat16)
    bfc = jnp.pad(params["b_fc"], ((0, 0), (0, Cp - C)))              # (1, Cp)

    # -- hoisted input projection: one big MXU matmul, emitted time-major ----
    # (default matmul precision = single-pass bf16 on the MXU; bias folded in)
    xw_f = jnp.einsum("bte,eg->tbg", x, w_ih_f) + b_f                # (T, Bp, 4Hg)
    xw_b_last = x[:, T - 1, :] @ w_ih_b + b_b                        # (Bp, 4Hg)

    grid = (Bp // TB, n_tc)

    in_specs = [
        pl.BlockSpec((Tc, TB, nG), lambda b, t: (t, b, 0)),   # xw_f (streamed over time)
        pl.BlockSpec((TB, nG),     lambda b, t: (b, 0)),      # xw_b_last
        pl.BlockSpec((Hg, nG),     lambda b, t: (0, 0)),      # whh_f
        pl.BlockSpec((Hg, nG),     lambda b, t: (0, 0)),      # whh_b
        pl.BlockSpec((TB, Hg),     lambda b, t: (b, 0)),      # h0f
        pl.BlockSpec((TB, Hg),     lambda b, t: (b, 0)),      # c0f
        pl.BlockSpec((TB, Hg),     lambda b, t: (b, 0)),      # h0b
        pl.BlockSpec((TB, Hg),     lambda b, t: (b, 0)),      # c0b
        pl.BlockSpec((Hg, Cp),     lambda b, t: (0, 0)),      # wfc_f
        pl.BlockSpec((Hg, Cp),     lambda b, t: (0, 0)),      # wfc_b
        pl.BlockSpec((1, Cp),      lambda b, t: (0, 0)),      # bfc
    ]
    out_specs = pl.BlockSpec((TB, Cp), lambda b, t: (b, 0))

    # Explicit scoped-VMEM budget from actual block sizes + headroom.
    f32b, bf16b = 4, 2
    est = (2 * Tc * TB * nG * f32b          # xw_f, double-buffered stream
           + 2 * TB * nG * f32b             # xw_b_last
           + 2 * 2 * Hg * nG * bf16b        # whh_f / whh_b
           + 2 * 4 * TB * Hg * f32b         # h0/c0 fwd+bwd
           + 2 * 2 * Hg * Cp * bf16b        # fc weight halves
           + 2 * Cp * f32b                  # fc bias
           + 2 * TB * Cp * f32b             # out
           + 2 * TB * Hg * f32b)            # h/c scratch
    vmem_limit = int(min(max(2 * est + (4 << 20), 32 << 20), 64 << 20))

    out_pad = pl.pallas_call(
        elmo_bilstm_kernel,
        out_shape=jax.ShapeDtypeStruct((Bp, Cp), jnp.float32),
        grid=grid,
        in_specs=in_specs,
        out_specs=out_specs,
        scratch_shapes=[pltpu.VMEM((TB, Hg), jnp.float32),
                        pltpu.VMEM((TB, Hg), jnp.float32)],
        compiler_params=pltpu.CompilerParams(
            dimension_semantics=("parallel", "arbitrary"),
            vmem_limit_bytes=vmem_limit),
    )(xw_f, xw_b_last, w_hh_f, w_hh_b, h0f, c0f, h0b, c0b, wfc_f, wfc_b, bfc)

    return out_pad[:B, :C]


# ---------------------------------------------------------------------------
# Deterministic parameter init (matches shapes / init schemes of the module)
# ---------------------------------------------------------------------------
def init_params(key, B, E, H, C):
    ks = jax.random.split(key, 14)
    k = 1.0 / math.sqrt(H)                 # PyTorch LSTM init bound

    def u(kk, shape, bound):
        return jax.random.uniform(kk, shape, jnp.float32, -bound, bound)

    params = {
        # forward direction (weights stored transposed for (B,K)@(K,N) matmul)
        "w_ih_f": u(ks[0], (E, 4 * H), k),
        "w_hh_f": u(ks[1], (H, 4 * H), k),
        "b_f":    u(ks[2], (1, 4 * H), k) + u(ks[3], (1, 4 * H), k),  # b_ih+b_hh
        # backward direction
        "w_ih_b": u(ks[4], (E, 4 * H), k),
        "w_hh_b": u(ks[5], (H, 4 * H), k),
        "b_b":    u(ks[6], (1, 4 * H), k) + u(ks[7], (1, 4 * H), k),
    }

    # h, c ~ xavier_normal_ on shape (2, B, H)
    xstd = math.sqrt(2.0 / (B * H + 2 * H))
    params["h0"] = xstd * jax.random.normal(ks[8], (2, B, H), jnp.float32)
    params["c0"] = xstd * jax.random.normal(ks[9], (2, B, H), jnp.float32)

    # fc: Linear(2H -> C), PyTorch default uniform(-1/sqrt(2H), 1/sqrt(2H))
    kf = 1.0 / math.sqrt(2 * H)
    params["w_fc"] = u(ks[10], (2 * H, C), kf)
    params["b_fc"] = u(ks[11], (1, C), kf)
    return params


# ---------------------------------------------------------------------------
# Pure-JAX reference (same semantics, default matmul precision)
# ---------------------------------------------------------------------------
def reference_forward(embeddings, params):
    B, T, E = embeddings.shape
    H = params["h0"].shape[-1]
    x_tbe = jnp.transpose(embeddings, (1, 0, 2))

    def step(h, c, xt, wih, whh, b):
        gates = xt @ wih + h @ whh + b
        i = jax.nn.sigmoid(gates[:, :H])
        f = jax.nn.sigmoid(gates[:, H:2 * H])
        g = jnp.tanh(gates[:, 2 * H:3 * H])
        o = jax.nn.sigmoid(gates[:, 3 * H:])
        c = f * c + i * g
        h = o * jnp.tanh(c)
        return h, c

    h, c = params["h0"][0], params["c0"][0]
    for t in range(T):
        h, c = step(h, c, x_tbe[t], params["w_ih_f"], params["w_hh_f"],
                    params["b_f"])
    h_b, _ = step(params["h0"][1], params["c0"][1], x_tbe[T - 1],
                  params["w_ih_b"], params["w_hh_b"], params["b_b"])
    out_last = jnp.concatenate([h, h_b], axis=-1)
    return out_last @ params["w_fc"] + params["b_fc"]


# ---------------------------------------------------------------------------
if __name__ == "__main__":
    B, T, E, H, C = 2, 8, 64, 32, 3      # batch, seq, embed_dim, hidden, classes
    key = jax.random.PRNGKey(0)
    kx, kp = jax.random.split(key)

    # ELMo output embeddings (stand-in for elmo(input)['elmo_representations'][0])
    embeddings = jax.random.normal(kx, (B, T, E), jnp.float32)
    params = init_params(kp, B, E, H, C)

    logits = jax.block_until_ready(elmo_bilstm_forward(embeddings, params))
    assert logits.shape == (B, C)

    ref = reference_forward(embeddings, params)
    # bf16-operand MXU matmuls in the kernel vs. default-precision f32 reference:
    # tolerance loosened accordingly (structural errors would be O(1)).
    np.testing.assert_allclose(np.asarray(logits), np.asarray(ref),
                               rtol=2e-2, atol=2e-2)
    print("KERNEL_OK")
</pallas_src>

<mosaic_0001>
module attributes {stable_mosaic.version = 11 : i64} {
  func.func @elmo_bilstm_kernel(%arg0: i32, %arg1: i32, %arg2: memref<8x8x128xf32, #tpu.memory_space<vmem>>, %arg3: memref<8x128xf32, #tpu.memory_space<vmem>>, %arg4: memref<32x128xbf16, #tpu.memory_space<vmem>>, %arg5: memref<32x128xbf16, #tpu.memory_space<vmem>>, %arg6: memref<8x32xf32, #tpu.memory_space<vmem>>, %arg7: memref<8x32xf32, #tpu.memory_space<vmem>>, %arg8: memref<8x32xf32, #tpu.memory_space<vmem>>, %arg9: memref<8x32xf32, #tpu.memory_space<vmem>>, %arg10: memref<32x128xbf16, #tpu.memory_space<vmem>>, %arg11: memref<32x128xbf16, #tpu.memory_space<vmem>>, %arg12: memref<1x128xf32, #tpu.memory_space<vmem>>, %arg13: memref<8x128xf32, #tpu.memory_space<vmem>>, %arg14: memref<8x32xf32, #tpu.memory_space<vmem>>, %arg15: memref<8x32xf32, #tpu.memory_space<vmem>>) attributes {dimension_semantics = [#tpu.dimension_semantics<parallel>, #tpu.dimension_semantics<arbitrary>], iteration_bounds = array<i64: 1, 1>, scalar_prefetch = 0 : i64, scratch_operands = 2 : i64, tpu.core_type = #tpu.core_type<tc>, window_params = [{transform_indices = @transform_0, window_bounds = array<i64: 8, 8, 128>}, {transform_indices = @transform_1, window_bounds = array<i64: 8, 128>}, {pipeline_mode = #tpu.pipeline_mode<synchronous>, transform_indices = @transform_2, window_bounds = array<i64: 32, 128>}, {pipeline_mode = #tpu.pipeline_mode<synchronous>, transform_indices = @transform_3, window_bounds = array<i64: 32, 128>}, {transform_indices = @transform_4, window_bounds = array<i64: 8, 32>}, {transform_indices = @transform_5, window_bounds = array<i64: 8, 32>}, {transform_indices = @transform_6, window_bounds = array<i64: 8, 32>}, {transform_indices = @transform_7, window_bounds = array<i64: 8, 32>}, {pipeline_mode = #tpu.pipeline_mode<synchronous>, transform_indices = @transform_8, window_bounds = array<i64: 32, 128>}, {pipeline_mode = #tpu.pipeline_mode<synchronous>, transform_indices = @transform_9, window_bounds = array<i64: 32, 128>}, {pipeline_mode = #tpu.pipeline_mode<synchronous>, transform_indices = @transform_10, window_bounds = array<i64: 1, 128>}, {transform_indices = @transform_11, window_bounds = array<i64: 8, 128>}]} {
    %c0_i32 = arith.constant 0 : i32
    %0 = arith.cmpi eq, %arg1, %c0_i32 : i32
    %1 = arith.extui %0 : i1 to i32
    %c0_i32_0 = arith.constant 0 : i32
    %2 = arith.cmpi ne, %1, %c0_i32_0 : i32
    scf.if %2 {
      %c0_60 = arith.constant 0 : index
      %c0_61 = arith.constant 0 : index
      %259 = vector.load %arg6[%c0_60, %c0_61] : memref<8x32xf32, #tpu.memory_space<vmem>>, vector<8x32xf32>
      %c0_62 = arith.constant 0 : index
      %c0_63 = arith.constant 0 : index
      %260 = vector.load %arg14[%c0_62, %c0_63] : memref<8x32xf32, #tpu.memory_space<vmem>>, vector<8x32xf32>
      tpu.vector_store %arg14[%c0_62, %c0_63], %259 {strides = array<i32>} : memref<8x32xf32, #tpu.memory_space<vmem>>, vector<8x32xf32>,
      %c0_64 = arith.constant 0 : index
      %c0_65 = arith.constant 0 : index
      %261 = vector.load %arg7[%c0_64, %c0_65] : memref<8x32xf32, #tpu.memory_space<vmem>>, vector<8x32xf32>
      %c0_66 = arith.constant 0 : index
      %c0_67 = arith.constant 0 : index
      %262 = vector.load %arg15[%c0_66, %c0_67] : memref<8x32xf32, #tpu.memory_space<vmem>>, vector<8x32xf32>
      tpu.vector_store %arg15[%c0_66, %c0_67], %261 {strides = array<i32>} : memref<8x32xf32, #tpu.memory_space<vmem>>, vector<8x32xf32>,
    } else {
    }
    %c0 = arith.constant 0 : index
    %c0_1 = arith.constant 0 : index
    %3 = vector.load %arg4[%c0, %c0_1] : memref<32x128xbf16, #tpu.memory_space<vmem>>, vector<32x128xbf16>
    %c0_2 = arith.constant 0 : index
    %c0_3 = arith.constant 0 : index
    %4 = vector.load %arg14[%c0_2, %c0_3] : memref<8x32xf32, #tpu.memory_space<vmem>>, vector<8x32xf32>
    %c0_4 = arith.constant 0 : index
    %c0_5 = arith.constant 0 : index
    %5 = vector.load %arg15[%c0_4, %c0_5] : memref<8x32xf32, #tpu.memory_space<vmem>>, vector<8x32xf32>
    %c0_i32_6 = arith.constant 0 : i32
    %6 = arith.index_cast %c0_i32_6 : i32 to index
    %c0_7 = arith.constant 0 : index
    %c0_8 = arith.constant 0 : index
    %7 = vector.load %arg2[%6, %c0_7, %c0_8] : memref<8x8x128xf32, #tpu.memory_space<vmem>>, vector<1x8x128xf32>
    %8 = vector.shape_cast %7 : vector<1x8x128xf32> to vector<8x128xf32>
    %9 = arith.truncf %4 : vector<8x32xf32> to vector<8x32xbf16>
    %cst = arith.constant dense<0.000000e+00> : vector<8x128xf32>
    %10 = tpu.matmul %9, %3, %cst {dimension_numbers = #tpu.dot_dimension_numbers<[1], [0], [0], [1], [0, 0, 1, 1], [], []>} : vector<8x32xbf16>, vector<32x128xbf16>, vector<8x128xf32> -> vector<8x128xf32>
    %11 = arith.addf %8, %10 : vector<8x128xf32>
    %12 = vector.extract_strided_slice %11 {offsets = [0, 0], sizes = [8, 32], strides = [1, 1]} : vector<8x128xf32> to vector<8x32xf32>
    %13 = arith.negf %12 : vector<8x32xf32>
    %14 = math.exp %13 : vector<8x32xf32>
    %cst_9 = arith.constant 1.000000e+00 : f32
    %15 = vector.broadcast %cst_9 : f32 to vector<8x32xf32>
    %16 = arith.addf %15, %14 : vector<8x32xf32>
    %17 = arith.divf %15, %16 : vector<8x32xf32>
    %18 = vector.extract_strided_slice %11 {offsets = [0, 32], sizes = [8, 32], strides = [1, 1]} : vector<8x128xf32> to vector<8x32xf32>
    %19 = arith.negf %18 : vector<8x32xf32>
    %20 = math.exp %19 : vector<8x32xf32>
    %cst_10 = arith.constant 1.000000e+00 : f32
    %21 = vector.broadcast %cst_10 : f32 to vector<8x32xf32>
    %22 = arith.addf %21, %20 : vector<8x32xf32>
    %23 = arith.divf %21, %22 : vector<8x32xf32>
    %24 = vector.extract_strided_slice %11 {offsets = [0, 64], sizes = [8, 32], strides = [1, 1]} : vector<8x128xf32> to vector<8x32xf32>
    %25 = math.tanh %24 : vector<8x32xf32>
    %26 = vector.extract_strided_slice %11 {offsets = [0, 96], sizes = [8, 32], strides = [1, 1]} : vector<8x128xf32> to vector<8x32xf32>
    %27 = arith.negf %26 : vector<8x32xf32>
    %28 = math.exp %27 : vector<8x32xf32>
    %cst_11 = arith.constant 1.000000e+00 : f32
    %29 = vector.broadcast %cst_11 : f32 to vector<8x32xf32>
    %30 = arith.addf %29, %28 : vector<8x32xf32>
    %31 = arith.divf %29, %30 : vector<8x32xf32>
    %32 = arith.mulf %23, %5 : vector<8x32xf32>
    %33 = arith.mulf %17, %25 : vector<8x32xf32>
    %34 = arith.addf %32, %33 : vector<8x32xf32>
    %35 = math.tanh %34 : vector<8x32xf32>
    %36 = arith.mulf %31, %35 : vector<8x32xf32>
    %c1_i32 = arith.constant 1 : i32
    %37 = arith.index_cast %c1_i32 : i32 to index
    %c0_12 = arith.constant 0 : index
    %c0_13 = arith.constant 0 : index
    %38 = vector.load %arg2[%37, %c0_12, %c0_13] : memref<8x8x128xf32, #tpu.memory_space<vmem>>, vector<1x8x128xf32>
    %39 = vector.shape_cast %38 : vector<1x8x128xf32> to vector<8x128xf32>
    %40 = arith.truncf %36 : vector<8x32xf32> to vector<8x32xbf16>
    %cst_14 = arith.constant dense<0.000000e+00> : vector<8x128xf32>
    %41 = tpu.matmul %40, %3, %cst_14 {dimension_numbers = #tpu.dot_dimension_numbers<[1], [0], [0], [1], [0, 0, 1, 1], [], []>} : vector<8x32xbf16>, vector<32x128xbf16>, vector<8x128xf32> -> vector<8x128xf32>
    %42 = arith.addf %39, %41 : vector<8x128xf32>
    %43 = vector.extract_strided_slice %42 {offsets = [0, 0], sizes = [8, 32], strides = [1, 1]} : vector<8x128xf32> to vector<8x32xf32>
    %44 = arith.negf %43 : vector<8x32xf32>
    %45 = math.exp %44 : vector<8x32xf32>
    %cst_15 = arith.constant 1.000000e+00 : f32
    %46 = vector.broadcast %cst_15 : f32 to vector<8x32xf32>
    %47 = arith.addf %46, %45 : vector<8x32xf32>
    %48 = arith.divf %46, %47 : vector<8x32xf32>
    %49 = vector.extract_strided_slice %42 {offsets = [0, 32], sizes = [8, 32], strides = [1, 1]} : vector<8x128xf32> to vector<8x32xf32>
    %50 = arith.negf %49 : vector<8x32xf32>
    %51 = math.exp %50 : vector<8x32xf32>
    %cst_16 = arith.constant 1.000000e+00 : f32
    %52 = vector.broadcast %cst_16 : f32 to vector<8x32xf32>
    %53 = arith.addf %52, %51 : vector<8x32xf32>
    %54 = arith.divf %52, %53 : vector<8x32xf32>
    %55 = vector.extract_strided_slice %42 {offsets = [0, 64], sizes = [8, 32], strides = [1, 1]} : vector<8x128xf32> to vector<8x32xf32>
    %56 = math.tanh %55 : vector<8x32xf32>
    %57 = vector.extract_strided_slice %42 {offsets = [0, 96], sizes = [8, 32], strides = [1, 1]} : vector<8x128xf32> to vector<8x32xf32>
    %58 = arith.negf %57 : vector<8x32xf32>
    %59 = math.exp %58 : vector<8x32xf32>
    %cst_17 = arith.constant 1.000000e+00 : f32
    %60 = vector.broadcast %cst_17 : f32 to vector<8x32xf32>
    %61 = arith.addf %60, %59 : vector<8x32xf32>
    %62 = arith.divf %60, %61 : vector<8x32xf32>
    %63 = arith.mulf %54, %34 : vector<8x32xf32>
    %64 = arith.mulf %48, %56 : vector<8x32xf32>
    %65 = arith.addf %63, %64 : vector<8x32xf32>
    %66 = math.tanh %65 : vector<8x32xf32>
    %67 = arith.mulf %62, %66 : vector<8x32xf32>
    %c2_i32 = arith.constant 2 : i32
    %68 = arith.index_cast %c2_i32 : i32 to index
    %c0_18 = arith.constant 0 : index
    %c0_19 = arith.constant 0 : index
    %69 = vector.load %arg2[%68, %c0_18, %c0_19] : memref<8x8x128xf32, #tpu.memory_space<vmem>>, vector<1x8x128xf32>
    %70 = vector.shape_cast %69 : vector<1x8x128xf32> to vector<8x128xf32>
    %71 = arith.truncf %67 : vector<8x32xf32> to vector<8x32xbf16>
    %cst_20 = arith.constant dense<0.000000e+00> : vector<8x128xf32>
    %72 = tpu.matmul %71, %3, %cst_20 {dimension_numbers = #tpu.dot_dimension_numbers<[1], [0], [0], [1], [0, 0, 1, 1], [], []>} : vector<8x32xbf16>, vector<32x128xbf16>, vector<8x128xf32> -> vector<8x128xf32>
    %73 = arith.addf %70, %72 : vector<8x128xf32>
    %74 = vector.extract_strided_slice %73 {offsets = [0, 0], sizes = [8, 32], strides = [1, 1]} : vector<8x128xf32> to vector<8x32xf32>
    %75 = arith.negf %74 : vector<8x32xf32>
    %76 = math.exp %75 : vector<8x32xf32>
    %cst_21 = arith.constant 1.000000e+00 : f32
    %77 = vector.broadcast %cst_21 : f32 to vector<8x32xf32>
    %78 = arith.addf %77, %76 : vector<8x32xf32>
    %79 = arith.divf %77, %78 : vector<8x32xf32>
    %80 = vector.extract_strided_slice %73 {offsets = [0, 32], sizes = [8, 32], strides = [1, 1]} : vector<8x128xf32> to vector<8x32xf32>
    %81 = arith.negf %80 : vector<8x32xf32>
    %82 = math.exp %81 : vector<8x32xf32>
    %cst_22 = arith.constant 1.000000e+00 : f32
    %83 = vector.broadcast %cst_22 : f32 to vector<8x32xf32>
    %84 = arith.addf %83, %82 : vector<8x32xf32>
    %85 = arith.divf %83, %84 : vector<8x32xf32>
    %86 = vector.extract_strided_slice %73 {offsets = [0, 64], sizes = [8, 32], strides = [1, 1]} : vector<8x128xf32> to vector<8x32xf32>
    %87 = math.tanh %86 : vector<8x32xf32>
    %88 = vector.extract_strided_slice %73 {offsets = [0, 96], sizes = [8, 32], strides = [1, 1]} : vector<8x128xf32> to vector<8x32xf32>
    %89 = arith.negf %88 : vector<8x32xf32>
    %90 = math.exp %89 : vector<8x32xf32>
    %cst_23 = arith.constant 1.000000e+00 : f32
    %91 = vector.broadcast %cst_23 : f32 to vector<8x32xf32>
    %92 = arith.addf %91, %90 : vector<8x32xf32>
    %93 = arith.divf %91, %92 : vector<8x32xf32>
    %94 = arith.mulf %85, %65 : vector<8x32xf32>
    %95 = arith.mulf %79, %87 : vector<8x32xf32>
    %96 = arith.addf %94, %95 : vector<8x32xf32>
    %97 = math.tanh %96 : vector<8x32xf32>
    %98 = arith.mulf %93, %97 : vector<8x32xf32>
    %c3_i32 = arith.constant 3 : i32
    %99 = arith.index_cast %c3_i32 : i32 to index
    %c0_24 = arith.constant 0 : index
    %c0_25 = arith.constant 0 : index
    %100 = vector.load %arg2[%99, %c0_24, %c0_25] : memref<8x8x128xf32, #tpu.memory_space<vmem>>, vector<1x8x128xf32>
    %101 = vector.shape_cast %100 : vector<1x8x128xf32> to vector<8x128xf32>
    %102 = arith.truncf %98 : vector<8x32xf32> to vector<8x32xbf16>
    %cst_26 = arith.constant dense<0.000000e+00> : vector<8x128xf32>
    %103 = tpu.matmul %102, %3, %cst_26 {dimension_numbers = #tpu.dot_dimension_numbers<[1], [0], [0], [1], [0, 0, 1, 1], [], []>} : vector<8x32xbf16>, vector<32x128xbf16>, vector<8x128xf32> -> vector<8x128xf32>
    %104 = arith.addf %101, %103 : vector<8x128xf32>
    %105 = vector.extract_strided_slice %104 {offsets = [0, 0], sizes = [8, 32], strides = [1, 1]} : vector<8x128xf32> to vector<8x32xf32>
    %106 = arith.negf %105 : vector<8x32xf32>
    %107 = math.exp %106 : vector<8x32xf32>
    %cst_27 = arith.constant 1.000000e+00 : f32
    %108 = vector.broadcast %cst_27 : f32 to vector<8x32xf32>
    %109 = arith.addf %108, %107 : vector<8x32xf32>
    %110 = arith.divf %108, %109 : vector<8x32xf32>
    %111 = vector.extract_strided_slice %104 {offsets = [0, 32], sizes = [8, 32], strides = [1, 1]} : vector<8x128xf32> to vector<8x32xf32>
    %112 = arith.negf %111 : vector<8x32xf32>
    %113 = math.exp %112 : vector<8x32xf32>
    %cst_28 = arith.constant 1.000000e+00 : f32
    %114 = vector.broadcast %cst_28 : f32 to vector<8x32xf32>
    %115 = arith.addf %114, %113 : vector<8x32xf32>
    %116 = arith.divf %114, %115 : vector<8x32xf32>
    %117 = vector.extract_strided_slice %104 {offsets = [0, 64], sizes = [8, 32], strides = [1, 1]} : vector<8x128xf32> to vector<8x32xf32>
    %118 = math.tanh %117 : vector<8x32xf32>
    %119 = vector.extract_strided_slice %104 {offsets = [0, 96], sizes = [8, 32], strides = [1, 1]} : vector<8x128xf32> to vector<8x32xf32>
    %120 = arith.negf %119 : vector<8x32xf32>
    %121 = math.exp %120 : vector<8x32xf32>
    %cst_29 = arith.constant 1.000000e+00 : f32
    %122 = vector.broadcast %cst_29 : f32 to vector<8x32xf32>
    %123 = arith.addf %122, %121 : vector<8x32xf32>
    %124 = arith.divf %122, %123 : vector<8x32xf32>
    %125 = arith.mulf %116, %96 : vector<8x32xf32>
    %126 = arith.mulf %110, %118 : vector<8x32xf32>
    %127 = arith.addf %125, %126 : vector<8x32xf32>
    %128 = math.tanh %127 : vector<8x32xf32>
    %129 = arith.mulf %124, %128 : vector<8x32xf32>
    %c4_i32 = arith.constant 4 : i32
    %130 = arith.index_cast %c4_i32 : i32 to index
    %c0_30 = arith.constant 0 : index
    %c0_31 = arith.constant 0 : index
    %131 = vector.load %arg2[%130, %c0_30, %c0_31] : memref<8x8x128xf32, #tpu.memory_space<vmem>>, vector<1x8x128xf32>
    %132 = vector.shape_cast %131 : vector<1x8x128xf32> to vector<8x128xf32>
    %133 = arith.truncf %129 : vector<8x32xf32> to vector<8x32xbf16>
    %cst_32 = arith.constant dense<0.000000e+00> : vector<8x128xf32>
    %134 = tpu.matmul %133, %3, %cst_32 {dimension_numbers = #tpu.dot_dimension_numbers<[1], [0], [0], [1], [0, 0, 1, 1], [], []>} : vector<8x32xbf16>, vector<32x128xbf16>, vector<8x128xf32> -> vector<8x128xf32>
    %135 = arith.addf %132, %134 : vector<8x128xf32>
    %136 = vector.extract_strided_slice %135 {offsets = [0, 0], sizes = [8, 32], strides = [1, 1]} : vector<8x128xf32> to vector<8x32xf32>
    %137 = arith.negf %136 : vector<8x32xf32>
    %138 = math.exp %137 : vector<8x32xf32>
    %cst_33 = arith.constant 1.000000e+00 : f32
    %139 = vector.broadcast %cst_33 : f32 to vector<8x32xf32>
    %140 = arith.addf %139, %138 : vector<8x32xf32>
    %141 = arith.divf %139, %140 : vector<8x32xf32>
    %142 = vector.extract_strided_slice %135 {offsets = [0, 32], sizes = [8, 32], strides = [1, 1]} : vector<8x128xf32> to vector<8x32xf32>
    %143 = arith.negf %142 : vector<8x32xf32>
    %144 = math.exp %143 : vector<8x32xf32>
    %cst_34 = arith.constant 1.000000e+00 : f32
    %145 = vector.broadcast %cst_34 : f32 to vector<8x32xf32>
    %146 = arith.addf %145, %144 : vector<8x32xf32>
    %147 = arith.divf %145, %146 : vector<8x32xf32>
    %148 = vector.extract_strided_slice %135 {offsets = [0, 64], sizes = [8, 32], strides = [1, 1]} : vector<8x128xf32> to vector<8x32xf32>
    %149 = math.tanh %148 : vector<8x32xf32>
    %150 = vector.extract_strided_slice %135 {offsets = [0, 96], sizes = [8, 32], strides = [1, 1]} : vector<8x128xf32> to vector<8x32xf32>
    %151 = arith.negf %150 : vector<8x32xf32>
    %152 = math.exp %151 : vector<8x32xf32>
    %cst_35 = arith.constant 1.000000e+00 : f32
    %153 = vector.broadcast %cst_35 : f32 to vector<8x32xf32>
    %154 = arith.addf %153, %152 : vector<8x32xf32>
    %155 = arith.divf %153, %154 : vector<8x32xf32>
    %156 = arith.mulf %147, %127 : vector<8x32xf32>
    %157 = arith.mulf %141, %149 : vector<8x32xf32>
    %158 = arith.addf %156, %157 : vector<8x32xf32>
    %159 = math.tanh %158 : vector<8x32xf32>
    %160 = arith.mulf %155, %159 : vector<8x32xf32>
    %c5_i32 = arith.constant 5 : i32
    %161 = arith.index_cast %c5_i32 : i32 to index
    %c0_36 = arith.constant 0 : index
    %c0_37 = arith.constant 0 : index
    %162 = vector.load %arg2[%161, %c0_36, %c0_37] : memref<8x8x128xf32, #tpu.memory_space<vmem>>, vector<1x8x128xf32>
    %163 = vector.shape_cast %162 : vector<1x8x128xf32> to vector<8x128xf32>
    %164 = arith.truncf %160 : vector<8x32xf32> to vector<8x32xbf16>
    %cst_38 = arith.constant dense<0.000000e+00> : vector<8x128xf32>
    %165 = tpu.matmul %164, %3, %cst_38 {dimension_numbers = #tpu.dot_dimension_numbers<[1], [0], [0], [1], [0, 0, 1, 1], [], []>} : vector<8x32xbf16>, vector<32x128xbf16>, vector<8x128xf32> -> vector<8x128xf32>
    %166 = arith.addf %163, %165 : vector<8x128xf32>
    %167 = vector.extract_strided_slice %166 {offsets = [0, 0], sizes = [8, 32], strides = [1, 1]} : vector<8x128xf32> to vector<8x32xf32>
    %168 = arith.negf %167 : vector<8x32xf32>
    %169 = math.exp %168 : vector<8x32xf32>
    %cst_39 = arith.constant 1.000000e+00 : f32
    %170 = vector.broadcast %cst_39 : f32 to vector<8x32xf32>
    %171 = arith.addf %170, %169 : vector<8x32xf32>
    %172 = arith.divf %170, %171 : vector<8x32xf32>
    %173 = vector.extract_strided_slice %166 {offsets = [0, 32], sizes = [8, 32], strides = [1, 1]} : vector<8x128xf32> to vector<8x32xf32>
    %174 = arith.negf %173 : vector<8x32xf32>
    %175 = math.exp %174 : vector<8x32xf32>
    %cst_40 = arith.constant 1.000000e+00 : f32
    %176 = vector.broadcast %cst_40 : f32 to vector<8x32xf32>
    %177 = arith.addf %176, %175 : vector<8x32xf32>
    %178 = arith.divf %176, %177 : vector<8x32xf32>
    %179 = vector.extract_strided_slice %166 {offsets = [0, 64], sizes = [8, 32], strides = [1, 1]} : vector<8x128xf32> to vector<8x32xf32>
    %180 = math.tanh %179 : vector<8x32xf32>
    %181 = vector.extract_strided_slice %166 {offsets = [0, 96], sizes = [8, 32], strides = [1, 1]} : vector<8x128xf32> to vector<8x32xf32>
    %182 = arith.negf %181 : vector<8x32xf32>
    %183 = math.exp %182 : vector<8x32xf32>
    %cst_41 = arith.constant 1.000000e+00 : f32
    %184 = vector.broadcast %cst_41 : f32 to vector<8x32xf32>
    %185 = arith.addf %184, %183 : vector<8x32xf32>
    %186 = arith.divf %184, %185 : vector<8x32xf32>
    %187 = arith.mulf %178, %158 : vector<8x32xf32>
    %188 = arith.mulf %172, %180 : vector<8x32xf32>
    %189 = arith.addf %187, %188 : vector<8x32xf32>
    %190 = math.tanh %189 : vector<8x32xf32>
    %191 = arith.mulf %186, %190 : vector<8x32xf32>
    %c6_i32 = arith.constant 6 : i32
    %192 = arith.index_cast %c6_i32 : i32 to index
    %c0_42 = arith.constant 0 : index
    %c0_43 = arith.constant 0 : index
    %193 = vector.load %arg2[%192, %c0_42, %c0_43] : memref<8x8x128xf32, #tpu.memory_space<vmem>>, vector<1x8x128xf32>
    %194 = vector.shape_cast %193 : vector<1x8x128xf32> to vector<8x128xf32>
    %195 = arith.truncf %191 : vector<8x32xf32> to vector<8x32xbf16>
    %cst_44 = arith.constant dense<0.000000e+00> : vector<8x128xf32>
    %196 = tpu.matmul %195, %3, %cst_44 {dimension_numbers = #tpu.dot_dimension_numbers<[1], [0], [0], [1], [0, 0, 1, 1], [], []>} : vector<8x32xbf16>, vector<32x128xbf16>, vector<8x128xf32> -> vector<8x128xf32>
    %197 = arith.addf %194, %196 : vector<8x128xf32>
    %198 = vector.extract_strided_slice %197 {offsets = [0, 0], sizes = [8, 32], strides = [1, 1]} : vector<8x128xf32> to vector<8x32xf32>
    %199 = arith.negf %198 : vector<8x32xf32>
    %200 = math.exp %199 : vector<8x32xf32>
    %cst_45 = arith.constant 1.000000e+00 : f32
    %201 = vector.broadcast %cst_45 : f32 to vector<8x32xf32>
    %202 = arith.addf %201, %200 : vector<8x32xf32>
    %203 = arith.divf %201, %202 : vector<8x32xf32>
    %204 = vector.extract_strided_slice %197 {offsets = [0, 32], sizes = [8, 32], strides = [1, 1]} : vector<8x128xf32> to vector<8x32xf32>
    %205 = arith.negf %204 : vector<8x32xf32>
    %206 = math.exp %205 : vector<8x32xf32>
    %cst_46 = arith.constant 1.000000e+00 : f32
    %207 = vector.broadcast %cst_46 : f32 to vector<8x32xf32>
    %208 = arith.addf %207, %206 : vector<8x32xf32>
    %209 = arith.divf %207, %208 : vector<8x32xf32>
    %210 = vector.extract_strided_slice %197 {offsets = [0, 64], sizes = [8, 32], strides = [1, 1]} : vector<8x128xf32> to vector<8x32xf32>
    %211 = math.tanh %210 : vector<8x32xf32>
    %212 = vector.extract_strided_slice %197 {offsets = [0, 96], sizes = [8, 32], strides = [1, 1]} : vector<8x128xf32> to vector<8x32xf32>
    %213 = arith.negf %212 : vector<8x32xf32>
    %214 = math.exp %213 : vector<8x32xf32>
    %cst_47 = arith.constant 1.000000e+00 : f32
    %215 = vector.broadcast %cst_47 : f32 to vector<8x32xf32>
    %216 = arith.addf %215, %214 : vector<8x32xf32>
    %217 = arith.divf %215, %216 : vector<8x32xf32>
    %218 = arith.mulf %209, %189 : vector<8x32xf32>
    %219 = arith.mulf %203, %211 : vector<8x32xf32>
    %220 = arith.addf %218, %219 : vector<8x32xf32>
    %221 = math.tanh %220 : vector<8x32xf32>
    %222 = arith.mulf %217, %221 : vector<8x32xf32>
    %c7_i32 = arith.constant 7 : i32
    %223 = arith.index_cast %c7_i32 : i32 to index
    %c0_48 = arith.constant 0 : index
    %c0_49 = arith.constant 0 : index
    %224 = vector.load %arg2[%223, %c0_48, %c0_49] : memref<8x8x128xf32, #tpu.memory_space<vmem>>, vector<1x8x128xf32>
    %225 = vector.shape_cast %224 : vector<1x8x128xf32> to vector<8x128xf32>
    %226 = arith.truncf %222 : vector<8x32xf32> to vector<8x32xbf16>
    %cst_50 = arith.constant dense<0.000000e+00> : vector<8x128xf32>
    %227 = tpu.matmul %226, %3, %cst_50 {dimension_numbers = #tpu.dot_dimension_numbers<[1], [0], [0], [1], [0, 0, 1, 1], [], []>} : vector<8x32xbf16>, vector<32x128xbf16>, vector<8x128xf32> -> vector<8x128xf32>
    %228 = arith.addf %225, %227 : vector<8x128xf32>
    %229 = vector.extract_strided_slice %228 {offsets = [0, 0], sizes = [8, 32], strides = [1, 1]} : vector<8x128xf32> to vector<8x32xf32>
    %230 = arith.negf %229 : vector<8x32xf32>
    %231 = math.exp %230 : vector<8x32xf32>
    %cst_51 = arith.constant 1.000000e+00 : f32
    %232 = vector.broadcast %cst_51 : f32 to vector<8x32xf32>
    %233 = arith.addf %232, %231 : vector<8x32xf32>
    %234 = arith.divf %232, %233 : vector<8x32xf32>
    %235 = vector.extract_strided_slice %228 {offsets = [0, 32], sizes = [8, 32], strides = [1, 1]} : vector<8x128xf32> to vector<8x32xf32>
    %236 = arith.negf %235 : vector<8x32xf32>
    %237 = math.exp %236 : vector<8x32xf32>
    %cst_52 = arith.constant 1.000000e+00 : f32
    %238 = vector.broadcast %cst_52 : f32 to vector<8x32xf32>
    %239 = arith.addf %238, %237 : vector<8x32xf32>
    %240 = arith.divf %238, %239 : vector<8x32xf32>
    %241 = vector.extract_strided_slice %228 {offsets = [0, 64], sizes = [8, 32], strides = [1, 1]} : vector<8x128xf32> to vector<8x32xf32>
    %242 = math.tanh %241 : vector<8x32xf32>
    %243 = vector.extract_strided_slice %228 {offsets = [0, 96], sizes = [8, 32], strides = [1, 1]} : vector<8x128xf32> to vector<8x32xf32>
    %244 = arith.negf %243 : vector<8x32xf32>
    %245 = math.exp %244 : vector<8x32xf32>
    %cst_53 = arith.constant 1.000000e+00 : f32
    %246 = vector.broadcast %cst_53 : f32 to vector<8x32xf32>
    %247 = arith.addf %246, %245 : vector<8x32xf32>
    %248 = arith.divf %246, %247 : vector<8x32xf32>
    %249 = arith.mulf %240, %220 : vector<8x32xf32>
    %250 = arith.mulf %234, %242 : vector<8x32xf32>
    %251 = arith.addf %249, %250 : vector<8x32xf32>
    %252 = math.tanh %251 : vector<8x32xf32>
    %253 = arith.mulf %248, %252 : vector<8x32xf32>
    %c8_i32 = arith.constant 8 : i32
    %c0_54 = arith.constant 0 : index
    %c0_55 = arith.constant 0 : index
    %254 = vector.load %arg14[%c0_54, %c0_55] : memref<8x32xf32, #tpu.memory_space<vmem>>, vector<8x32xf32>
    tpu.vector_store %arg14[%c0_54, %c0_55], %253 {strides = array<i32>} : memref<8x32xf32, #tpu.memory_space<vmem>>, vector<8x32xf32>,
    %c0_56 = arith.constant 0 : index
    %c0_57 = arith.constant 0 : index
    %255 = vector.load %arg15[%c0_56, %c0_57] : memref<8x32xf32, #tpu.memory_space<vmem>>, vector<8x32xf32>
    tpu.vector_store %arg15[%c0_56, %c0_57], %251 {strides = array<i32>} : memref<8x32xf32, #tpu.memory_space<vmem>>, vector<8x32xf32>,
    %c0_i32_58 = arith.constant 0 : i32
    %256 = arith.cmpi eq, %arg1, %c0_i32_58 : i32
    %257 = arith.extui %256 : i1 to i32
    %c0_i32_59 = arith.constant 0 : i32
    %258 = arith.cmpi ne, %257, %c0_i32_59 : i32
    scf.if %258 {
      %c0_60 = arith.constant 0 : index
      %c0_61 = arith.constant 0 : index
      %259 = vector.load %arg3[%c0_60, %c0_61] : memref<8x128xf32, #tpu.memory_space<vmem>>, vector<8x128xf32>
      %c0_62 = arith.constant 0 : index
      %c0_63 = arith.constant 0 : index
      %260 = vector.load %arg8[%c0_62, %c0_63] : memref<8x32xf32, #tpu.memory_space<vmem>>, vector<8x32xf32>
      %c0_64 = arith.constant 0 : index
      %c0_65 = arith.constant 0 : index
      %261 = vector.load %arg9[%c0_64, %c0_65] : memref<8x32xf32, #tpu.memory_space<vmem>>, vector<8x32xf32>
      %c0_66 = arith.constant 0 : index
      %c0_67 = arith.constant 0 : index
      %262 = vector.load %arg5[%c0_66, %c0_67] : memref<32x128xbf16, #tpu.memory_space<vmem>>, vector<32x128xbf16>
      %263 = arith.truncf %260 : vector<8x32xf32> to vector<8x32xbf16>
      %cst_68 = arith.constant dense<0.000000e+00> : vector<8x128xf32>
      %264 = tpu.matmul %263, %262, %cst_68 {dimension_numbers = #tpu.dot_dimension_numbers<[1], [0], [0], [1], [0, 0, 1, 1], [], []>} : vector<8x32xbf16>, vector<32x128xbf16>, vector<8x128xf32> -> vector<8x128xf32>
      %265 = arith.addf %259, %264 : vector<8x128xf32>
      %266 = vector.extract_strided_slice %265 {offsets = [0, 0], sizes = [8, 32], strides = [1, 1]} : vector<8x128xf32> to vector<8x32xf32>
      %267 = arith.negf %266 : vector<8x32xf32>
      %268 = math.exp %267 : vector<8x32xf32>
      %cst_69 = arith.constant 1.000000e+00 : f32
      %269 = vector.broadcast %cst_69 : f32 to vector<8x32xf32>
      %270 = arith.addf %269, %268 : vector<8x32xf32>
      %271 = arith.divf %269, %270 : vector<8x32xf32>
      %272 = vector.extract_strided_slice %265 {offsets = [0, 32], sizes = [8, 32], strides = [1, 1]} : vector<8x128xf32> to vector<8x32xf32>
      %273 = arith.negf %272 : vector<8x32xf32>
      %274 = math.exp %273 : vector<8x32xf32>
      %cst_70 = arith.constant 1.000000e+00 : f32
      %275 = vector.broadcast %cst_70 : f32 to vector<8x32xf32>
      %276 = arith.addf %275, %274 : vector<8x32xf32>
      %277 = arith.divf %275, %276 : vector<8x32xf32>
      %278 = vector.extract_strided_slice %265 {offsets = [0, 64], sizes = [8, 32], strides = [1, 1]} : vector<8x128xf32> to vector<8x32xf32>
      %279 = math.tanh %278 : vector<8x32xf32>
      %280 = vector.extract_strided_slice %265 {offsets = [0, 96], sizes = [8, 32], strides = [1, 1]} : vector<8x128xf32> to vector<8x32xf32>
      %281 = arith.negf %280 : vector<8x32xf32>
      %282 = math.exp %281 : vector<8x32xf32>
      %cst_71 = arith.constant 1.000000e+00 : f32
      %283 = vector.broadcast %cst_71 : f32 to vector<8x32xf32>
      %284 = arith.addf %283, %282 : vector<8x32xf32>
      %285 = arith.divf %283, %284 : vector<8x32xf32>
      %286 = arith.mulf %277, %261 : vector<8x32xf32>
      %287 = arith.mulf %271, %279 : vector<8x32xf32>
      %288 = arith.addf %286, %287 : vector<8x32xf32>
      %289 = math.tanh %288 : vector<8x32xf32>
      %290 = arith.mulf %285, %289 : vector<8x32xf32>
      %291 = arith.truncf %253 : vector<8x32xf32> to vector<8x32xbf16>
      %c0_72 = arith.constant 0 : index
      %c0_73 = arith.constant 0 : index
      %292 = vector.load %arg10[%c0_72, %c0_73] : memref<32x128xbf16, #tpu.memory_space<vmem>>, vector<32x128xbf16>
      %cst_74 = arith.constant dense<0.000000e+00> : vector<8x128xf32>
      %293 = tpu.matmul %291, %292, %cst_74 {dimension_numbers = #tpu.dot_dimension_numbers<[1], [0], [0], [1], [0, 0, 1, 1], [], []>} : vector<8x32xbf16>, vector<32x128xbf16>, vector<8x128xf32> -> vector<8x128xf32>
      %294 = arith.truncf %290 : vector<8x32xf32> to vector<8x32xbf16>
      %c0_75 = arith.constant 0 : index
      %c0_76 = arith.constant 0 : index
      %295 = vector.load %arg11[%c0_75, %c0_76] : memref<32x128xbf16, #tpu.memory_space<vmem>>, vector<32x128xbf16>
      %cst_77 = arith.constant dense<0.000000e+00> : vector<8x128xf32>
      %296 = tpu.matmul %294, %295, %cst_77 {dimension_numbers = #tpu.dot_dimension_numbers<[1], [0], [0], [1], [0, 0, 1, 1], [], []>} : vector<8x32xbf16>, vector<32x128xbf16>, vector<8x128xf32> -> vector<8x128xf32>
      %297 = arith.addf %293, %296 : vector<8x128xf32>
      %c0_78 = arith.constant 0 : index
      %c0_79 = arith.constant 0 : index
      %298 = vector.load %arg12[%c0_78, %c0_79] : memref<1x128xf32, #tpu.memory_space<vmem>>, vector<1x128xf32>
      %299 = vector.broadcast %298 : vector<1x128xf32> to vector<8x128xf32>
      %300 = arith.addf %297, %299 : vector<8x128xf32>
      %c0_80 = arith.constant 0 : index
      %c0_81 = arith.constant 0 : index
      %301 = vector.load %arg13[%c0_80, %c0_81] : memref<8x128xf32, #tpu.memory_space<vmem>>, vector<8x128xf32>
      tpu.vector_store %arg13[%c0_80, %c0_81], %300 {strides = array<i32>} : memref<8x128xf32, #tpu.memory_space<vmem>>, vector<8x128xf32>,
    } else {
    }
    return
  }
  func.func @transform_0(%arg0: i32, %arg1: i32) -> (i32, i32, i32) {
    %c0_i32 = arith.constant 0 : i32
    %c0_i32_0 = arith.constant 0 : i32
    return %arg1, %arg0, %c0_i32 : i32, i32, i32
  }
  func.func @transform_1(%arg0: i32, %arg1: i32) -> (i32, i32) {
    %c0_i32 = arith.constant 0 : i32
    %c0_i32_0 = arith.constant 0 : i32
    return %arg0, %c0_i32 : i32, i32
  }
  func.func @transform_2(%arg0: i32, %arg1: i32) -> (i32, i32) {
    %c0_i32 = arith.constant 0 : i32
    %c0_i32_0 = arith.constant 0 : i32
    %c0_i32_1 = arith.constant 0 : i32
    return %c0_i32, %c0_i32_0 : i32, i32
  }
  func.func @transform_3(%arg0: i32, %arg1: i32) -> (i32, i32) {
    %c0_i32 = arith.constant 0 : i32
    %c0_i32_0 = arith.constant 0 : i32
    %c0_i32_1 = arith.constant 0 : i32
    return %c0_i32, %c0_i32_0 : i32, i32
  }
  func.func @transform_4(%arg0: i32, %arg1: i32) -> (i32, i32) {
    %c0_i32 = arith.constant 0 : i32
    %c0_i32_0 = arith.constant 0 : i32
    return %arg0, %c0_i32 : i32, i32
  }
  func.func @transform_5(%arg0: i32, %arg1: i32) -> (i32, i32) {
    %c0_i32 = arith.constant 0 : i32
    %c0_i32_0 = arith.constant 0 : i32
    return %arg0, %c0_i32 : i32, i32
  }
  func.func @transform_6(%arg0: i32, %arg1: i32) -> (i32, i32) {
    %c0_i32 = arith.constant 0 : i32
    %c0_i32_0 = arith.constant 0 : i32
    return %arg0, %c0_i32 : i32, i32
  }
  func.func @transform_7(%arg0: i32, %arg1: i32) -> (i32, i32) {
    %c0_i32 = arith.constant 0 : i32
    %c0_i32_0 = arith.constant 0 : i32
    return %arg0, %c0_i32 : i32, i32
  }
  func.func @transform_8(%arg0: i32, %arg1: i32) -> (i32, i32) {
    %c0_i32 = arith.constant 0 : i32
    %c0_i32_0 = arith.constant 0 : i32
    %c0_i32_1 = arith.constant 0 : i32
    return %c0_i32, %c0_i32_0 : i32, i32
  }
  func.func @transform_9(%arg0: i32, %arg1: i32) -> (i32, i32) {
    %c0_i32 = arith.constant 0 : i32
    %c0_i32_0 = arith.constant 0 : i32
    %c0_i32_1 = arith.constant 0 : i32
    return %c0_i32, %c0_i32_0 : i32, i32
  }
  func.func @transform_10(%arg0: i32, %arg1: i32) -> (i32, i32) {
    %c0_i32 = arith.constant 0 : i32
    %c0_i32_0 = arith.constant 0 : i32
    %c0_i32_1 = arith.constant 0 : i32
    return %c0_i32, %c0_i32_0 : i32, i32
  }
  func.func @transform_11(%arg0: i32, %arg1: i32) -> (i32, i32) {
    %c0_i32 = arith.constant 0 : i32
    %c0_i32_0 = arith.constant 0 : i32
    return %arg0, %c0_i32 : i32, i32
  }
}

</mosaic_0001>

<llo_original>
// kernel: tpu_custom_call.1
$region0: #{tpu_custom_call.1}
  #allocation0 [shape = 'u32[]', space=smem, size = 0x4, offset = 0x4, fixed_abs, tag = 'smem constant byte address 0x4 - core index']
  #allocation1 [shape = 'u32[144,128]{1,0:T(1,128)}', space=vmem, size = 0x12000, scoped, tag = 'internal scratch']
  #allocation2 [shape = 'f32[8,32]{1,0:T(8,128)}', space=vmem, size = 0x1000, scoped, tag = 'scratch operand']
  #allocation3 [shape = 'f32[8,32]{1,0:T(8,128)}', space=vmem, size = 0x1000, scoped, tag = 'scratch operand']
  %s0 = inlined_call_operand.hbm [shape: f32[8,8,128], index: 0, kind: input, shape index: {}]
  %s1 = inlined_call_operand.hbm [shape: f32[8,128], index: 1, kind: input, shape index: {}]
  %s2 = inlined_call_operand.hbm [shape: bf16[32,128], index: 2, kind: input, shape index: {}]
  %s3 = inlined_call_operand.hbm [shape: bf16[32,128], index: 3, kind: input, shape index: {}]
  %s4 = inlined_call_operand.hbm [shape: f32[8,32], index: 4, kind: input, shape index: {}]
  %s5 = inlined_call_operand.hbm [shape: f32[8,32], index: 5, kind: input, shape index: {}]
  %s6 = inlined_call_operand.hbm [shape: f32[8,32], index: 6, kind: input, shape index: {}]
  %s7 = inlined_call_operand.hbm [shape: f32[8,32], index: 7, kind: input, shape index: {}]
  %s8 = inlined_call_operand.vmem [shape: bf16[32,128], index: 8, kind: input, shape index: {}]
  %s9 = inlined_call_operand.vmem [shape: bf16[32,128], index: 9, kind: input, shape index: {}]
  %s10 = inlined_call_operand.vmem [shape: f32[1,128], index: 10, kind: input, shape index: {}]
  %s11 = inlined_call_operand.hbm [shape: f32[8,128], index: 11, kind: output, shape index: {}]
  %s12 = sld [smem:[#allocation0]]
  $region94: #{tpu_custom_call.1} parent=0
    _
  %s14 = ssub.s32 1, %s12
  %s15 = scalar_select 0, %s14, %s12
  $region1: #{tpu_custom_call.1} parent=0
    #allocation4 [shape = 'u8[32768]{0}', space=vmem, size = 0x8000, scoped, tag = 'input window, operand 0, single buffered']
    #allocation5 [shape = 's32[1]{0}', space=sflag, size = 0x4, scoped, tag = 'scoped memory for tpu_custom_call.1']
    #allocation6 [shape = 's32[1]{0}', space=sflag, size = 0x4, scoped, tag = 'scoped memory for tpu_custom_call.1']
    #allocation7 [shape = 'u8[4096]{0}', space=vmem, size = 0x1000, scoped, tag = 'input window, operand 1, single buffered']
    #allocation8 [shape = 's32[1]{0}', space=sflag, size = 0x4, scoped, tag = 'scoped memory for tpu_custom_call.1']
    #allocation9 [shape = 'u8[8192]{0}', space=vmem, size = 0x2000, scoped, tag = 'input window, operand 2, single buffered']
    #allocation10 [shape = 'u8[8192]{0}', space=vmem, size = 0x2000, scoped, tag = 'input window, operand 3, single buffered']
    #allocation11 [shape = 's32[1]{0}', space=sflag, size = 0x4, scoped, tag = 'scoped memory for tpu_custom_call.1']
    #allocation12 [shape = 'u8[4096]{0}', space=vmem, size = 0x1000, scoped, tag = 'input window, operand 4, single buffered']
    #allocation13 [shape = 'u8[4096]{0}', space=vmem, size = 0x1000, scoped, tag = 'input window, operand 5, single buffered']
    #allocation14 [shape = 's32[1]{0}', space=sflag, size = 0x4, scoped, tag = 'scoped memory for tpu_custom_call.1']
    #allocation15 [shape = 'u8[4096]{0}', space=vmem, size = 0x1000, scoped, tag = 'input window, operand 6, single buffered']
    #allocation16 [shape = 'u8[4096]{0}', space=vmem, size = 0x1000, scoped, tag = 'input window, operand 7, single buffered']
    #allocation17 [shape = 's32[1]{0}', space=sflag, size = 0x4, scoped, tag = 'scoped memory for tpu_custom_call.1']
    #allocation18 [shape = 'u8[4096]{0}', space=vmem, size = 0x1000, scoped, tag = 'output window, operand 0, single buffered']
    %16 = vsyncpa [#allocation5], 0
    %17 = vsyncpa [#allocation8], 0
    %18 = vsyncpa [#allocation11], 0
    %19 = vsyncpa [#allocation14], 0
    %20 = vsyncpa [#allocation17], 0
    %21 = vsyncpa [#allocation6], 0
    // Predicated region
    $region2: #{tpu_custom_call.1} parent=1 // pred_check
      _
    $region3: #{tpu_custom_call.1} parent=1 // pred_check_branch
      %23 = sbr.rel (0) target = $region5
    $region4: #{tpu_custom_call.1} parent=1 // pred_region
      %s25 = ssub.s32 1024, 1024
      %26 = vsyncadd [#allocation5], %s25
      %s27 = sshll.u32 [#allocation4], 4
      %s28 = int_to_ptr.vmem [resolvable:$true] %s27
      %33 = dma.hbm_to_vmem [thread:$0]  %s0, 1024, %s28, [#allocation5], 128, 128, 8
    $region5: #{tpu_custom_call.1} parent=1 // pred_fallthru
      _
    // Predicated region
    $region6: #{tpu_custom_call.1} parent=1 // pred_check
      _
    $region7: #{tpu_custom_call.1} parent=1 // pred_check_branch
      %35 = sbr.rel (0) target = $region9
    $region8: #{tpu_custom_call.1} parent=1 // pred_region
      %s37 = ssub.s32 128, 128
      %38 = vsyncadd [#allocation8], %s37
      %s40 = sshll.u32 [#allocation7], 4
      %s41 = int_to_ptr.vmem [resolvable:$true] %s40
      %43 = dma.hbm_to_vmem [thread:$0]  %s1, 128, %s41, [#allocation8]
    $region9: #{tpu_custom_call.1} parent=1 // pred_fallthru
      _
    // Predicated region
    $region10: #{tpu_custom_call.1} parent=1 // pred_check
      _
    $region11: #{tpu_custom_call.1} parent=1 // pred_check_branch
      %45 = sbr.rel (0) target = $region13
    $region12: #{tpu_custom_call.1} parent=1 // pred_region
      %s47 = ssub.s32 256, 256
      %48 = vsyncadd [#allocation8], %s47
      %s49 = sshll.u32 [#allocation9], 4
      %s50 = int_to_ptr.vmem [resolvable:$true] %s49
      %55 = dma.hbm_to_vmem [thread:$0]  %s2, 256, %s50, [#allocation8], 64, 64, 4
    $region13: #{tpu_custom_call.1} parent=1 // pred_fallthru
      _
    // Predicated region
    $region14: #{tpu_custom_call.1} parent=1 // pred_check
      _
    $region15: #{tpu_custom_call.1} parent=1 // pred_check_branch
      %57 = sbr.rel (0) target = $region17
    $region16: #{tpu_custom_call.1} parent=1 // pred_region
      %s59 = ssub.s32 256, 256
      %60 = vsyncadd [#allocation11], %s59
      %s61 = sshll.u32 [#allocation10], 4
      %s62 = int_to_ptr.vmem [resolvable:$true] %s61
      %67 = dma.hbm_to_vmem [thread:$0]  %s3, 256, %s62, [#allocation11], 64, 64, 4
    $region17: #{tpu_custom_call.1} parent=1 // pred_fallthru
      _
    // Predicated region
    $region18: #{tpu_custom_call.1} parent=1 // pred_check
      _
    $region19: #{tpu_custom_call.1} parent=1 // pred_check_branch
      %69 = sbr.rel (0) target = $region21
    $region20: #{tpu_custom_call.1} parent=1 // pred_region
      %s71 = ssub.s32 128, 128
      %72 = vsyncadd [#allocation11], %s71
      %s74 = sshll.u32 [#allocation12], 4
      %s75 = int_to_ptr.vmem [resolvable:$true] %s74
      %77 = dma.hbm_to_vmem [thread:$0]  %s4, 128, %s75, [#allocation11]
    $region21: #{tpu_custom_call.1} parent=1 // pred_fallthru
      _
    // Predicated region
    $region22: #{tpu_custom_call.1} parent=1 // pred_check
      _
    $region23: #{tpu_custom_call.1} parent=1 // pred_check_branch
      %79 = sbr.rel (0) target = $region25
    $region24: #{tpu_custom_call.1} parent=1 // pred_region
      %s81 = ssub.s32 128, 128
      %82 = vsyncadd [#allocation14], %s81
      %s84 = sshll.u32 [#allocation13], 4
      %s85 = int_to_ptr.vmem [resolvable:$true] %s84
      %87 = dma.hbm_to_vmem [thread:$0]  %s5, 128, %s85, [#allocation14]
    $region25: #{tpu_custom_call.1} parent=1 // pred_fallthru
      _
    // Predicated region
    $region26: #{tpu_custom_call.1} parent=1 // pred_check
      _
    $region27: #{tpu_custom_call.1} parent=1 // pred_check_branch
      %89 = sbr.rel (0) target = $region29
    $region28: #{tpu_custom_call.1} parent=1 // pred_region
      %s91 = ssub.s32 128, 128
      %92 = vsyncadd [#allocation14], %s91
      %s94 = sshll.u32 [#allocation15], 4
      %s95 = int_to_ptr.vmem [resolvable:$true] %s94
      %97 = dma.hbm_to_vmem [thread:$0]  %s6, 128, %s95, [#allocation14]
    $region29: #{tpu_custom_call.1} parent=1 // pred_fallthru
      _
    // Predicated region
    $region30: #{tpu_custom_call.1} parent=1 // pred_check
      _
    $region31: #{tpu_custom_call.1} parent=1 // pred_check_branch
      %99 = sbr.rel (0) target = $region33
    $region32: #{tpu_custom_call.1} parent=1 // pred_region
      %s101 = ssub.s32 128, 128
      %102 = vsyncadd [#allocation17], %s101
      %s104 = sshll.u32 [#allocation16], 4
      %s105 = int_to_ptr.vmem [resolvable:$true] %s104
      %107 = dma.hbm_to_vmem [thread:$0]  %s7, 128, %s105, [#allocation17]
    $region33: #{tpu_custom_call.1} parent=1 // pred_fallthru
      _
    // Predicated region
    $region34: #{tpu_custom_call.1} parent=1 // pred_check
      _
    $region35: #{tpu_custom_call.1} parent=1 // pred_check_branch
      %109 = sbr.rel (0) target = $region37
    $region36: #{tpu_custom_call.1} parent=1 // pred_region
      _
    $region37: #{tpu_custom_call.1} parent=1 // pred_fallthru
      _
    // Predicated region
    $region38: #{tpu_custom_call.1} parent=1 // pred_check
      _
    $region39: #{tpu_custom_call.1} parent=1 // pred_check_branch
      %111 = sbr.rel (0) target = $region41
    $region40: #{tpu_custom_call.1} parent=1 // pred_region
      _
    $region41: #{tpu_custom_call.1} parent=1 // pred_fallthru
      _
    // Predicated region
    $region42: #{tpu_custom_call.1} parent=1 // pred_check
      _
    $region43: #{tpu_custom_call.1} parent=1 // pred_check_branch
      %113 = sbr.rel (0) target = $region45
    $region44: #{tpu_custom_call.1} parent=1 // pred_region
      _
    $region45: #{tpu_custom_call.1} parent=1 // pred_fallthru
      _
    // Predicated region
    $region46: #{tpu_custom_call.1} parent=1 // pred_check
      _
    $region47: #{tpu_custom_call.1} parent=1 // pred_check_branch
      %115 = sbr.rel (0) target = $region49
    $region48: #{tpu_custom_call.1} parent=1 // pred_region
      %116 = dma.done [#allocation5], 1024
    $region49: #{tpu_custom_call.1} parent=1 // pred_fallthru
      _
    // Predicated region
    $region50: #{tpu_custom_call.1} parent=1 // pred_check
      _
    $region51: #{tpu_custom_call.1} parent=1 // pred_check_branch
      %118 = sbr.rel (0) target = $region53
    $region52: #{tpu_custom_call.1} parent=1 // pred_region
      %119 = dma.done [#allocation8], 128
    $region53: #{tpu_custom_call.1} parent=1 // pred_fallthru
      _
    // Predicated region
    $region54: #{tpu_custom_call.1} parent=1 // pred_check
      _
    $region55: #{tpu_custom_call.1} parent=1 // pred_check_branch
      %121 = sbr.rel (0) target = $region57
    $region56: #{tpu_custom_call.1} parent=1 // pred_region
      %122 = dma.done [#allocation8], 256
    $region57: #{tpu_custom_call.1} parent=1 // pred_fallthru
      _
    // Predicated region
    $region58: #{tpu_custom_call.1} parent=1 // pred_check
      _
    $region59: #{tpu_custom_call.1} parent=1 // pred_check_branch
      %124 = sbr.rel (0) target = $region61
    $region60: #{tpu_custom_call.1} parent=1 // pred_region
      %125 = dma.done [#allocation11], 256
    $region61: #{tpu_custom_call.1} parent=1 // pred_fallthru
      _
    // Predicated region
    $region62: #{tpu_custom_call.1} parent=1 // pred_check
      _
    $region63: #{tpu_custom_call.1} parent=1 // pred_check_branch
      %127 = sbr.rel (0) target = $region65
    $region64: #{tpu_custom_call.1} parent=1 // pred_region
      %128 = dma.done [#allocation11], 128
    $region65: #{tpu_custom_call.1} parent=1 // pred_fallthru
      _
    // Predicated region
    $region66: #{tpu_custom_call.1} parent=1 // pred_check
      _
    $region67: #{tpu_custom_call.1} parent=1 // pred_check_branch
      %130 = sbr.rel (0) target = $region69
    $region68: #{tpu_custom_call.1} parent=1 // pred_region
      %131 = dma.done [#allocation14], 128
    $region69: #{tpu_custom_call.1} parent=1 // pred_fallthru
      _
    // Predicated region
    $region70: #{tpu_custom_call.1} parent=1 // pred_check
      _
    $region71: #{tpu_custom_call.1} parent=1 // pred_check_branch
      %133 = sbr.rel (0) target = $region73
    $region72: #{tpu_custom_call.1} parent=1 // pred_region
      %134 = dma.done [#allocation14], 128
    $region73: #{tpu_custom_call.1} parent=1 // pred_fallthru
      _
    // Predicated region
    $region74: #{tpu_custom_call.1} parent=1 // pred_check
      _
    $region75: #{tpu_custom_call.1} parent=1 // pred_check_branch
      %136 = sbr.rel (0) target = $region77
    $region76: #{tpu_custom_call.1} parent=1 // pred_region
      %137 = dma.done [#allocation17], 128
    $region77: #{tpu_custom_call.1} parent=1 // pred_fallthru
      _
    %p139 = scmp.eq.s32.totalorder 0, 0
    // Predicated region
    $region78: #{tpu_custom_call.1} parent=1 // pred_check
      %p140 = pneg %p139
    $region79: #{tpu_custom_call.1} parent=1 // pred_check_branch
      %142 = sbr.rel (%p140) target = $region81
    $region80: #{tpu_custom_call.1} parent=1 // pred_region
      %v143 = vld [vmem:[#allocation12] sm:$0xff]
      %vm144 = vcmask 261120
      %145 = vst.msk [vmem:[#allocation2] sm:$0xff] %vm144, %v143
      %v146 = vld [vmem:[#allocation13] sm:$0xff]
      %147 = vst.msk [vmem:[#allocation3] sm:$0xff] %vm144, %v146
    $region81: #{tpu_custom_call.1} parent=1 // pred_fallthru
      _
    %v148 = vld [vmem:[#allocation9] sm:$0xf]
    %v149 = vld [vmem:[#allocation9 + $0x4] sm:$0xf]
    %v150 = vld [vmem:[#allocation9 + $0x8] sm:$0xf]
    %v151 = vld [vmem:[#allocation9 + $0xc] sm:$0xf]
    %v152 = vld [vmem:[#allocation2] sm:$0xff]
    %v153 = vld [vmem:[#allocation3] sm:$0xff]
    %v154 = vld [vmem:[#allocation4] sm:$0xff]
    %v155 = vpack.c.bf16 %v152, %v152
    %v160 = vunpack.c.l.b16 %v148
    %v161 = vunpack.c.l.b16 %v149
    %v162 = vunpack.c.l.b16 %v150
    %v163 = vunpack.c.l.b16 %v151
    %v164 = vpack.c.b16 %v161, %v160
    %v165 = vpack.c.b16 %v163, %v162
    %vm168 = vcmask 261120
    %v170 = vsel %vm168, %v155, 0
    %172 = vmatprep.subr.bf16.mxu0 0
    %173 = vmatpush1.bf16.msra.mxu0 %v164
    %174 = vmatprep.subr.bf16.mxu0 0
    %175 = vmatpush1.bf16.msra.mxu0 %v165
    %176 = vmatprep.subr.bf16.mxu0 0
    %177 = vmatpush1.bf16.msra.mxu0 0
    %178 = vmatprep.subr.bf16.mxu0 0
    %179 = vmatpush1.bf16.msra.mxu0 0
    %180 = vmatprep.subr.bf16.mxu0 0
    %181 = vmatpush1.bf16.msra.mxu0 0
    %182 = vmatprep.subr.bf16.mxu0 0
    %183 = vmatpush1.bf16.msra.mxu0 0
    %184 = vmatprep.subr.bf16.mxu0 0
    %185 = vmatpush1.bf16.msra.mxu0 0
    %186 = vmatprep.subr.bf16.mxu0 0
    %187 = vmatpush1.bf16.msra.mxu0 0
    %188 = vmatprep.subr.bf16.mxu0 0
    %189 = vmatpush1.bf16.msra.mxu0 0
    %190 = vmatprep.subr.bf16.mxu0 0
    %191 = vmatpush1.bf16.msra.mxu0 0
    %192 = vmatprep.subr.bf16.mxu0 0
    %193 = vmatpush1.bf16.msra.mxu0 0
    %194 = vmatprep.subr.bf16.mxu0 0
    %195 = vmatpush1.bf16.msra.mxu0 0
    %196 = vmatprep.subr.bf16.mxu0 0
    %197 = vmatpush1.bf16.msra.mxu0 0
    %198 = vmatprep.subr.bf16.mxu0 0
    %199 = vmatpush1.bf16.msra.mxu0 0
    %200 = vmatprep.subr.bf16.mxu0 0
    %201 = vmatpush1.bf16.msra.mxu0 0
    %202 = vmatprep.subr.bf16.mxu0 0
    %203 = vmatpush1.bf16.msra.mxu0 0
    %204 = vmatprep.mubr.bf16.mxu0 0
    %205 = vmatmul.mubr.bf16.gmra.mrb[0].mxu0 %v170
    %v206 = vpop.f32.mrb[0].mxu0
    %v207 = vadd.f32 0.0, %v206
    %v208 = vpop.f32.mrb[0].mxu0
    %v209 = vpop.f32.mrb[0].mxu0
    %v210 = vpop.f32.mrb[0].mxu0
    %211 = vdwg.mxu0
    %v212 = vadd.f32 %v154, %v207
    %v213 = vxor.u32 %v212, 2147483648
    %v214 = vmul.f32 %v213, 1.442695
    %v215 = vpow.pop %v214
    %v216 = vadd.f32 %v215, 1.0
    %v217 = vrcp.pop %v216
    %v218 = vmul.f32 1.0, %v217
    %v219 = vtanh.pop %v212
    %221 = vrot.lane.b32.xlu0 %v153, 32
    %v222 = vpop.permute.xlu0 %221
    %v224 = vmul.f32 %v218, %v222
    %226 = vrot.lane.b32.xlu0 %v219, 64
    %v227 = vpop.permute.xlu0 %226
    %v229 = vmul.f32 %v218, %v227
    %231 = vrot.lane.b32.xlu0 %v229, 32
    %v232 = vpop.permute.xlu0 %231
    %v234 = vadd.f32 %v224, %v232
    %v235 = vtanh.pop %v234
    %237 = vrot.lane.b32.xlu0 %v235, 64
    %v238 = vpop.permute.xlu0 %237
    %v240 = vmul.f32 %v218, %v238
    %s241 = scalar_lea.vmem [#allocation4], 8
    %v242 = vld [vmem:[%s241] sm:$0xff]
    %v243 = vpack.c.bf16 %v240, %v240
    %245 = vrot.lane.b32.xlu0 %v243, 32
    %v246 = vpop.permute.xlu0 %245
    %v248 = vsel %vm168, %v246, 0
    %250 = vmatprep.subr.bf16.mxu0 0
    %251 = vmatpush1.bf16.msra.mxu0 %v164
    %252 = vmatprep.subr.bf16.mxu0 0
    %253 = vmatpush1.bf16.msra.mxu0 %v165
    %254 = vmatprep.subr.bf16.mxu0 0
    %255 = vmatpush1.bf16.msra.mxu0 0
    %256 = vmatprep.subr.bf16.mxu0 0
    %257 = vmatpush1.bf16.msra.mxu0 0
    %258 = vmatprep.subr.bf16.mxu0 0
    %259 = vmatpush1.bf16.msra.mxu0 0
    %260 = vmatprep.subr.bf16.mxu0 0
    %261 = vmatpush1.bf16.msra.mxu0 0
    %262 = vmatprep.subr.bf16.mxu0 0
    %263 = vmatpush1.bf16.msra.mxu0 0
    %264 = vmatprep.subr.bf16.mxu0 0
    %265 = vmatpush1.bf16.msra.mxu0 0
    %266 = vmatprep.subr.bf16.mxu0 0
    %267 = vmatpush1.bf16.msra.mxu0 0
    %268 = vmatprep.subr.bf16.mxu0 0
    %269 = vmatpush1.bf16.msra.mxu0 0
    %270 = vmatprep.subr.bf16.mxu0 0
    %271 = vmatpush1.bf16.msra.mxu0 0
    %272 = vmatprep.subr.bf16.mxu0 0
    %273 = vmatpush1.bf16.msra.mxu0 0
    %274 = vmatprep.subr.bf16.mxu0 0
    %275 = vmatpush1.bf16.msra.mxu0 0
    %276 = vmatprep.subr.bf16.mxu0 0
    %277 = vmatpush1.bf16.msra.mxu0 0
    %278 = vmatprep.subr.bf16.mxu0 0
    %279 = vmatpush1.bf16.msra.mxu0 0
    %280 = vmatprep.subr.bf16.mxu0 0
    %281 = vmatpush1.bf16.msra.mxu0 0
    %282 = vmatprep.mubr.bf16.mxu0 0
    %283 = vmatmul.mubr.bf16.gmra.mrb[0].mxu0 %v248
    %v284 = vpop.f32.mrb[0].mxu0
    %v285 = vadd.f32 0.0, %v284
    %v286 = vpop.f32.mrb[0].mxu0
    %v287 = vpop.f32.mrb[0].mxu0
    %v288 = vpop.f32.mrb[0].mxu0
    %289 = vdwg.mxu0
    %v290 = vadd.f32 %v242, %v285
    %v291 = vxor.u32 %v290, 2147483648
    %v292 = vmul.f32 %v291, 1.442695
    %v293 = vpow.pop %v292
    %v294 = vadd.f32 %v293, 1.0
    %v295 = vrcp.pop %v294
    %v296 = vmul.f32 1.0, %v295
    %v297 = vtanh.pop %v290
    %v298 = vmul.f32 %v296, %v234
    %300 = vrot.lane.b32.xlu0 %v297, 64
    %v301 = vpop.permute.xlu0 %300
    %v303 = vmul.f32 %v296, %v301
    %305 = vrot.lane.b32.xlu0 %v303, 32
    %v306 = vpop.permute.xlu0 %305
    %v308 = vadd.f32 %v298, %v306
    %v309 = vtanh.pop %v308
    %311 = vrot.lane.b32.xlu0 %v309, 64
    %v312 = vpop.permute.xlu0 %311
    %v314 = vmul.f32 %v296, %v312
    %s315 = scalar_lea.vmem [#allocation4], 16
    %v316 = vld [vmem:[%s315] sm:$0xff]
    %v317 = vpack.c.bf16 %v314, %v314
    %319 = vrot.lane.b32.xlu0 %v317, 32
    %v320 = vpop.permute.xlu0 %319
    %v322 = vsel %vm168, %v320, 0
    %324 = vmatprep.subr.bf16.mxu0 0
    %325 = vmatpush1.bf16.msra.mxu0 %v164
    %326 = vmatprep.subr.bf16.mxu0 0
    %327 = vmatpush1.bf16.msra.mxu0 %v165
    %328 = vmatprep.subr.bf16.mxu0 0
    %329 = vmatpush1.bf16.msra.mxu0 0
    %330 = vmatprep.subr.bf16.mxu0 0
    %331 = vmatpush1.bf16.msra.mxu0 0
    %332 = vmatprep.subr.bf16.mxu0 0
    %333 = vmatpush1.bf16.msra.mxu0 0
    %334 = vmatprep.subr.bf16.mxu0 0
    %335 = vmatpush1.bf16.msra.mxu0 0
    %336 = vmatprep.subr.bf16.mxu0 0
    %337 = vmatpush1.bf16.msra.mxu0 0
    %338 = vmatprep.subr.bf16.mxu0 0
    %339 = vmatpush1.bf16.msra.mxu0 0
    %340 = vmatprep.subr.bf16.mxu0 0
    %341 = vmatpush1.bf16.msra.mxu0 0
    %342 = vmatprep.subr.bf16.mxu0 0
    %343 = vmatpush1.bf16.msra.mxu0 0
    %344 = vmatprep.subr.bf16.mxu0 0
    %345 = vmatpush1.bf16.msra.mxu0 0
    %346 = vmatprep.subr.bf16.mxu0 0
    %347 = vmatpush1.bf16.msra.mxu0 0
    %348 = vmatprep.subr.bf16.mxu0 0
    %349 = vmatpush1.bf16.msra.mxu0 0
    %350 = vmatprep.subr.bf16.mxu0 0
    %351 = vmatpush1.bf16.msra.mxu0 0
    %352 = vmatprep.subr.bf16.mxu0 0
    %353 = vmatpush1.bf16.msra.mxu0 0
    %354 = vmatprep.subr.bf16.mxu0 0
    %355 = vmatpush1.bf16.msra.mxu0 0
    %356 = vmatprep.mubr.bf16.mxu0 0
    %357 = vmatmul.mubr.bf16.gmra.mrb[0].mxu0 %v322
    %v358 = vpop.f32.mrb[0].mxu0
    %v359 = vadd.f32 0.0, %v358
    %v360 = vpop.f32.mrb[0].mxu0
    %v361 = vpop.f32.mrb[0].mxu0
    %v362 = vpop.f32.mrb[0].mxu0
    %363 = vdwg.mxu0
    %v364 = vadd.f32 %v316, %v359
    %v365 = vxor.u32 %v364, 2147483648
    %v366 = vmul.f32 %v365, 1.442695
    %v367 = vpow.pop %v366
    %v368 = vadd.f32 %v367, 1.0
    %v369 = vrcp.pop %v368
    %v370 = vmul.f32 1.0, %v369
    %v371 = vtanh.pop %v364
    %v372 = vmul.f32 %v370, %v308
    %374 = vrot.lane.b32.xlu0 %v371, 64
    %v375 = vpop.permute.xlu0 %374
    %v377 = vmul.f32 %v370, %v375
    %379 = vrot.lane.b32.xlu0 %v377, 32
    %v380 = vpop.permute.xlu0 %379
    %v382 = vadd.f32 %v372, %v380
    %v383 = vtanh.pop %v382
    %385 = vrot.lane.b32.xlu0 %v383, 64
    %v386 = vpop.permute.xlu0 %385
    %v388 = vmul.f32 %v370, %v386
    %s389 = scalar_lea.vmem [#allocation4], 24
    %v390 = vld [vmem:[%s389] sm:$0xff]
    %v391 = vpack.c.bf16 %v388, %v388
    %393 = vrot.lane.b32.xlu0 %v391, 32
    %v394 = vpop.permute.xlu0 %393
    %v396 = vsel %vm168, %v394, 0
    %398 = vmatprep.subr.bf16.mxu0 0
    %399 = vmatpush1.bf16.msra.mxu0 %v164
    %400 = vmatprep.subr.bf16.mxu0 0
    %401 = vmatpush1.bf16.msra.mxu0 %v165
    %402 = vmatprep.subr.bf16.mxu0 0
    %403 = vmatpush1.bf16.msra.mxu0 0
    %404 = vmatprep.subr.bf16.mxu0 0
    %405 = vmatpush1.bf16.msra.mxu0 0
    %406 = vmatprep.subr.bf16.mxu0 0
    %407 = vmatpush1.bf16.msra.mxu0 0
    %408 = vmatprep.subr.bf16.mxu0 0
    %409 = vmatpush1.bf16.msra.mxu0 0
    %410 = vmatprep.subr.bf16.mxu0 0
    %411 = vmatpush1.bf16.msra.mxu0 0
    %412 = vmatprep.subr.bf16.mxu0 0
    %413 = vmatpush1.bf16.msra.mxu0 0
    %414 = vmatprep.subr.bf16.mxu0 0
    %415 = vmatpush1.bf16.msra.mxu0 0
    %416 = vmatprep.subr.bf16.mxu0 0
    %417 = vmatpush1.bf16.msra.mxu0 0
    %418 = vmatprep.subr.bf16.mxu0 0
    %419 = vmatpush1.bf16.msra.mxu0 0
    %420 = vmatprep.subr.bf16.mxu0 0
    %421 = vmatpush1.bf16.msra.mxu0 0
    %422 = vmatprep.subr.bf16.mxu0 0
    %423 = vmatpush1.bf16.msra.mxu0 0
    %424 = vmatprep.subr.bf16.mxu0 0
    %425 = vmatpush1.bf16.msra.mxu0 0
    %426 = vmatprep.subr.bf16.mxu0 0
    %427 = vmatpush1.bf16.msra.mxu0 0
    %428 = vmatprep.subr.bf16.mxu0 0
    %429 = vmatpush1.bf16.msra.mxu0 0
    %430 = vmatprep.mubr.bf16.mxu0 0
    %431 = vmatmul.mubr.bf16.gmra.mrb[0].mxu0 %v396
    %v432 = vpop.f32.mrb[0].mxu0
    %v433 = vadd.f32 0.0, %v432
    %v434 = vpop.f32.mrb[0].mxu0
    %v435 = vpop.f32.mrb[0].mxu0
    %v436 = vpop.f32.mrb[0].mxu0
    %437 = vdwg.mxu0
    %v438 = vadd.f32 %v390, %v433
    %v439 = vxor.u32 %v438, 2147483648
    %v440 = vmul.f32 %v439, 1.442695
    %v441 = vpow.pop %v440
    %v442 = vadd.f32 %v441, 1.0
    %v443 = vrcp.pop %v442
    %v444 = vmul.f32 1.0, %v443
    %v445 = vtanh.pop %v438
    %v446 = vmul.f32 %v444, %v382
    %448 = vrot.lane.b32.xlu0 %v445, 64
    %v449 = vpop.permute.xlu0 %448
    %v451 = vmul.f32 %v444, %v449
    %453 = vrot.lane.b32.xlu0 %v451, 32
    %v454 = vpop.permute.xlu0 %453
    %v456 = vadd.f32 %v446, %v454
    %v457 = vtanh.pop %v456
    %459 = vrot.lane.b32.xlu0 %v457, 64
    %v460 = vpop.permute.xlu0 %459
    %v462 = vmul.f32 %v444, %v460
    %s463 = scalar_lea.vmem [#allocation4], 32
    %v464 = vld [vmem:[%s463] sm:$0xff]
    %v465 = vpack.c.bf16 %v462, %v462
    %467 = vrot.lane.b32.xlu0 %v465, 32
    %v468 = vpop.permute.xlu0 %467
    %v470 = vsel %vm168, %v468, 0
    %472 = vmatprep.subr.bf16.mxu0 0
    %473 = vmatpush1.bf16.msra.mxu0 %v164
    %474 = vmatprep.subr.bf16.mxu0 0
    %475 = vmatpush1.bf16.msra.mxu0 %v165
    %476 = vmatprep.subr.bf16.mxu0 0
    %477 = vmatpush1.bf16.msra.mxu0 0
    %478 = vmatprep.subr.bf16.mxu0 0
    %479 = vmatpush1.bf16.msra.mxu0 0
    %480 = vmatprep.subr.bf16.mxu0 0
    %481 = vmatpush1.bf16.msra.mxu0 0
    %482 = vmatprep.subr.bf16.mxu0 0
    %483 = vmatpush1.bf16.msra.mxu0 0
    %484 = vmatprep.subr.bf16.mxu0 0
    %485 = vmatpush1.bf16.msra.mxu0 0
    %486 = vmatprep.subr.bf16.mxu0 0
    %487 = vmatpush1.bf16.msra.mxu0 0
    %488 = vmatprep.subr.bf16.mxu0 0
    %489 = vmatpush1.bf16.msra.mxu0 0
    %490 = vmatprep.subr.bf16.mxu0 0
    %491 = vmatpush1.bf16.msra.mxu0 0
    %492 = vmatprep.subr.bf16.mxu0 0
    %493 = vmatpush1.bf16.msra.mxu0 0
    %494 = vmatprep.subr.bf16.mxu0 0
    %495 = vmatpush1.bf16.msra.mxu0 0
    %496 = vmatprep.subr.bf16.mxu0 0
    %497 = vmatpush1.bf16.msra.mxu0 0
    %498 = vmatprep.subr.bf16.mxu0 0
    %499 = vmatpush1.bf16.msra.mxu0 0
    %500 = vmatprep.subr.bf16.mxu0 0
    %501 = vmatpush1.bf16.msra.mxu0 0
    %502 = vmatprep.subr.bf16.mxu0 0
    %503 = vmatpush1.bf16.msra.mxu0 0
    %504 = vmatprep.mubr.bf16.mxu0 0
    %505 = vmatmul.mubr.bf16.gmra.mrb[0].mxu0 %v470
    %v506 = vpop.f32.mrb[0].mxu0
    %v507 = vadd.f32 0.0, %v506
    %v508 = vpop.f32.mrb[0].mxu0
    %v509 = vpop.f32.mrb[0].mxu0
    %v510 = vpop.f32.mrb[0].mxu0
    %511 = vdwg.mxu0
    %v512 = vadd.f32 %v464, %v507
    %v513 = vxor.u32 %v512, 2147483648
    %v514 = vmul.f32 %v513, 1.442695
    %v515 = vpow.pop %v514
    %v516 = vadd.f32 %v515, 1.0
    %v517 = vrcp.pop %v516
    %v518 = vmul.f32 1.0, %v517
    %v519 = vtanh.pop %v512
    %v520 = vmul.f32 %v518, %v456
    %522 = vrot.lane.b32.xlu0 %v519, 64
    %v523 = vpop.permute.xlu0 %522
    %v525 = vmul.f32 %v518, %v523
    %527 = vrot.lane.b32.xlu0 %v525, 32
    %v528 = vpop.permute.xlu0 %527
    %v530 = vadd.f32 %v520, %v528
    %v531 = vtanh.pop %v530
    %533 = vrot.lane.b32.xlu0 %v531, 64
    %v534 = vpop.permute.xlu0 %533
    %v536 = vmul.f32 %v518, %v534
    %s537 = scalar_lea.vmem [#allocation4], 40
    %v538 = vld [vmem:[%s537] sm:$0xff]
    %v539 = vpack.c.bf16 %v536, %v536
    %541 = vrot.lane.b32.xlu0 %v539, 32
    %v542 = vpop.permute.xlu0 %541
    %v544 = vsel %vm168, %v542, 0
    %546 = vmatprep.subr.bf16.mxu0 0
    %547 = vmatpush1.bf16.msra.mxu0 %v164
    %548 = vmatprep.subr.bf16.mxu0 0
    %549 = vmatpush1.bf16.msra.mxu0 %v165
    %550 = vmatprep.subr.bf16.mxu0 0
    %551 = vmatpush1.bf16.msra.mxu0 0
    %552 = vmatprep.subr.bf16.mxu0 0
    %553 = vmatpush1.bf16.msra.mxu0 0
    %554 = vmatprep.subr.bf16.mxu0 0
    %555 = vmatpush1.bf16.msra.mxu0 0
    %556 = vmatprep.subr.bf16.mxu0 0
    %557 = vmatpush1.bf16.msra.mxu0 0
    %558 = vmatprep.subr.bf16.mxu0 0
    %559 = vmatpush1.bf16.msra.mxu0 0
    %560 = vmatprep.subr.bf16.mxu0 0
    %561 = vmatpush1.bf16.msra.mxu0 0
    %562 = vmatprep.subr.bf16.mxu0 0
    %563 = vmatpush1.bf16.msra.mxu0 0
    %564 = vmatprep.subr.bf16.mxu0 0
    %565 = vmatpush1.bf16.msra.mxu0 0
    %566 = vmatprep.subr.bf16.mxu0 0
    %567 = vmatpush1.bf16.msra.mxu0 0
    %568 = vmatprep.subr.bf16.mxu0 0
    %569 = vmatpush1.bf16.msra.mxu0 0
    %570 = vmatprep.subr.bf16.mxu0 0
    %571 = vmatpush1.bf16.msra.mxu0 0
    %572 = vmatprep.subr.bf16.mxu0 0
    %573 = vmatpush1.bf16.msra.mxu0 0
    %574 = vmatprep.subr.bf16.mxu0 0
    %575 = vmatpush1.bf16.msra.mxu0 0
    %576 = vmatprep.subr.bf16.mxu0 0
    %577 = vmatpush1.bf16.msra.mxu0 0
    %578 = vmatprep.mubr.bf16.mxu0 0
    %579 = vmatmul.mubr.bf16.gmra.mrb[0].mxu0 %v544
    %v580 = vpop.f32.mrb[0].mxu0
    %v581 = vadd.f32 0.0, %v580
    %v582 = vpop.f32.mrb[0].mxu0
    %v583 = vpop.f32.mrb[0].mxu0
    %v584 = vpop.f32.mrb[0].mxu0
    %585 = vdwg.mxu0
    %v586 = vadd.f32 %v538, %v581
    %v587 = vxor.u32 %v586, 2147483648
    %v588 = vmul.f32 %v587, 1.442695
    %v589 = vpow.pop %v588
    %v590 = vadd.f32 %v589, 1.0
    %v591 = vrcp.pop %v590
    %v592 = vmul.f32 1.0, %v591
    %v593 = vtanh.pop %v586
    %v594 = vmul.f32 %v592, %v530
    %596 = vrot.lane.b32.xlu0 %v593, 64
    %v597 = vpop.permute.xlu0 %596
    %v599 = vmul.f32 %v592, %v597
    %601 = vrot.lane.b32.xlu0 %v599, 32
    %v602 = vpop.permute.xlu0 %601
    %v604 = vadd.f32 %v594, %v602
    %v605 = vtanh.pop %v604
    %607 = vrot.lane.b32.xlu0 %v605, 64
    %v608 = vpop.permute.xlu0 %607
    %v610 = vmul.f32 %v592, %v608
    %s611 = scalar_lea.vmem [#allocation4], 48
    %v612 = vld [vmem:[%s611] sm:$0xff]
    %v613 = vpack.c.bf16 %v610, %v610
    %615 = vrot.lane.b32.xlu0 %v613, 32
    %v616 = vpop.permute.xlu0 %615
    %v618 = vsel %vm168, %v616, 0
    %620 = vmatprep.subr.bf16.mxu0 0
    %621 = vmatpush1.bf16.msra.mxu0 %v164
    %622 = vmatprep.subr.bf16.mxu0 0
    %623 = vmatpush1.bf16.msra.mxu0 %v165
    %624 = vmatprep.subr.bf16.mxu0 0
    %625 = vmatpush1.bf16.msra.mxu0 0
    %626 = vmatprep.subr.bf16.mxu0 0
    %627 = vmatpush1.bf16.msra.mxu0 0
    %628 = vmatprep.subr.bf16.mxu0 0
    %629 = vmatpush1.bf16.msra.mxu0 0
    %630 = vmatprep.subr.bf16.mxu0 0
    %631 = vmatpush1.bf16.msra.mxu0 0
    %632 = vmatprep.subr.bf16.mxu0 0
    %633 = vmatpush1.bf16.msra.mxu0 0
    %634 = vmatprep.subr.bf16.mxu0 0
    %635 = vmatpush1.bf16.msra.mxu0 0
    %636 = vmatprep.subr.bf16.mxu0 0
    %637 = vmatpush1.bf16.msra.mxu0 0
    %638 = vmatprep.subr.bf16.mxu0 0
    %639 = vmatpush1.bf16.msra.mxu0 0
    %640 = vmatprep.subr.bf16.mxu0 0
    %641 = vmatpush1.bf16.msra.mxu0 0
    %642 = vmatprep.subr.bf16.mxu0 0
    %643 = vmatpush1.bf16.msra.mxu0 0
    %644 = vmatprep.subr.bf16.mxu0 0
    %645 = vmatpush1.bf16.msra.mxu0 0
    %646 = vmatprep.subr.bf16.mxu0 0
    %647 = vmatpush1.bf16.msra.mxu0 0
    %648 = vmatprep.subr.bf16.mxu0 0
    %649 = vmatpush1.bf16.msra.mxu0 0
    %650 = vmatprep.subr.bf16.mxu0 0
    %651 = vmatpush1.bf16.msra.mxu0 0
    %652 = vmatprep.mubr.bf16.mxu0 0
    %653 = vmatmul.mubr.bf16.gmra.mrb[0].mxu0 %v618
    %v654 = vpop.f32.mrb[0].mxu0
    %v655 = vadd.f32 0.0, %v654
    %v656 = vpop.f32.mrb[0].mxu0
    %v657 = vpop.f32.mrb[0].mxu0
    %v658 = vpop.f32.mrb[0].mxu0
    %659 = vdwg.mxu0
    %v660 = vadd.f32 %v612, %v655
    %v661 = vxor.u32 %v660, 2147483648
    %v662 = vmul.f32 %v661, 1.442695
    %v663 = vpow.pop %v662
    %v664 = vadd.f32 %v663, 1.0
    %v665 = vrcp.pop %v664
    %v666 = vmul.f32 1.0, %v665
    %v667 = vtanh.pop %v660
    %v668 = vmul.f32 %v666, %v604
    %670 = vrot.lane.b32.xlu0 %v667, 64
    %v671 = vpop.permute.xlu0 %670
    %v673 = vmul.f32 %v666, %v671
    %675 = vrot.lane.b32.xlu0 %v673, 32
    %v676 = vpop.permute.xlu0 %675
    %v678 = vadd.f32 %v668, %v676
    %v679 = vtanh.pop %v678
    %681 = vrot.lane.b32.xlu0 %v679, 64
    %v682 = vpop.permute.xlu0 %681
    %v684 = vmul.f32 %v666, %v682
    %s685 = scalar_lea.vmem [#allocation4], 56
    %v686 = vld [vmem:[%s685] sm:$0xff]
    %v687 = vpack.c.bf16 %v684, %v684
    %689 = vrot.lane.b32.xlu0 %v687, 32
    %v690 = vpop.permute.xlu0 %689
    %v692 = vsel %vm168, %v690, 0
    %694 = vmatprep.subr.bf16.mxu0 0
    %695 = vmatpush1.bf16.msra.mxu0 %v164
    %696 = vmatprep.subr.bf16.mxu0 0
    %697 = vmatpush1.bf16.msra.mxu0 %v165
    %698 = vmatprep.subr.bf16.mxu0 0
    %699 = vmatpush1.bf16.msra.mxu0 0
    %700 = vmatprep.subr.bf16.mxu0 0
    %701 = vmatpush1.bf16.msra.mxu0 0
    %702 = vmatprep.subr.bf16.mxu0 0
    %703 = vmatpush1.bf16.msra.mxu0 0
    %704 = vmatprep.subr.bf16.mxu0 0
    %705 = vmatpush1.bf16.msra.mxu0 0
    %706 = vmatprep.subr.bf16.mxu0 0
    %707 = vmatpush1.bf16.msra.mxu0 0
    %708 = vmatprep.subr.bf16.mxu0 0
    %709 = vmatpush1.bf16.msra.mxu0 0
    %710 = vmatprep.subr.bf16.mxu0 0
    %711 = vmatpush1.bf16.msra.mxu0 0
    %712 = vmatprep.subr.bf16.mxu0 0
    %713 = vmatpush1.bf16.msra.mxu0 0
    %714 = vmatprep.subr.bf16.mxu0 0
    %715 = vmatpush1.bf16.msra.mxu0 0
    %716 = vmatprep.subr.bf16.mxu0 0
    %717 = vmatpush1.bf16.msra.mxu0 0
    %718 = vmatprep.subr.bf16.mxu0 0
    %719 = vmatpush1.bf16.msra.mxu0 0
    %720 = vmatprep.subr.bf16.mxu0 0
    %721 = vmatpush1.bf16.msra.mxu0 0
    %722 = vmatprep.subr.bf16.mxu0 0
    %723 = vmatpush1.bf16.msra.mxu0 0
    %724 = vmatprep.subr.bf16.mxu0 0
    %725 = vmatpush1.bf16.msra.mxu0 0
    %726 = vmatprep.mubr.bf16.mxu0 0
    %727 = vmatmul.mubr.bf16.gmra.mrb[0].mxu0 %v692
    %v728 = vpop.f32.mrb[0].mxu0
    %v729 = vadd.f32 0.0, %v728
    %v730 = vpop.f32.mrb[0].mxu0
    %v731 = vpop.f32.mrb[0].mxu0
    %v732 = vpop.f32.mrb[0].mxu0
    %733 = vdwg.mxu0
    %v734 = vadd.f32 %v686, %v729
    %v735 = vxor.u32 %v734, 2147483648
    %v736 = vmul.f32 %v735, 1.442695
    %v737 = vpow.pop %v736
    %v738 = vadd.f32 %v737, 1.0
    %v739 = vrcp.pop %v738
    %v740 = vmul.f32 1.0, %v739
    %v741 = vtanh.pop %v734
    %v742 = vmul.f32 %v740, %v678
    %744 = vrot.lane.b32.xlu0 %v741, 64
    %v745 = vpop.permute.xlu0 %744
    %v747 = vmul.f32 %v740, %v745
    %749 = vrot.lane.b32.xlu0 %v747, 32
    %v750 = vpop.permute.xlu0 %749
    %v752 = vadd.f32 %v742, %v750
    %v753 = vtanh.pop %v752
    %755 = vrot.lane.b32.xlu0 %v753, 64
    %v756 = vpop.permute.xlu0 %755
    %v758 = vmul.f32 %v740, %v756
    %760 = vrot.lane.b32.xlu0 %v758, 32
    %v761 = vpop.permute.xlu0 %760
    %763 = vst.msk [vmem:[#allocation2] sm:$0xff] %vm168, %v761
    %765 = vrot.lane.b32.xlu0 %v752, 96
    %v766 = vpop.permute.xlu0 %765
    %768 = vst.msk [vmem:[#allocation3] sm:$0xff] %vm168, %v766
    // Predicated region
    $region82: #{tpu_custom_call.1} parent=1 // pred_check
      %p769 = pneg %p139
    $region83: #{tpu_custom_call.1} parent=1 // pred_check_branch
      %771 = sbr.rel (%p769) target = $region85
    $region84: #{tpu_custom_call.1} parent=1 // pred_region
      %v772 = vld [vmem:[#allocation7] sm:$0xff]
      %v773 = vld [vmem:[#allocation15] sm:$0xff]
      %v774 = vld [vmem:[#allocation16] sm:$0xff]
      %v775 = vld [vmem:[#allocation10] sm:$0xf]
      %v776 = vld [vmem:[#allocation10 + $0x4] sm:$0xf]
      %v777 = vld [vmem:[#allocation10 + $0x8] sm:$0xf]
      %v778 = vld [vmem:[#allocation10 + $0xc] sm:$0xf]
      %v779 = vpack.c.bf16 %v773, %v773
      %v784 = vunpack.c.l.b16 %v775
      %v785 = vunpack.c.l.b16 %v776
      %v786 = vunpack.c.l.b16 %v777
      %v787 = vunpack.c.l.b16 %v778
      %v788 = vpack.c.b16 %v785, %v784
      %v789 = vpack.c.b16 %v787, %v786
      %v793 = vsel %vm168, %v779, 0
      %795 = vmatprep.subr.bf16.mxu0 0
      %796 = vmatpush1.bf16.msra.mxu0 %v788
      %797 = vmatprep.subr.bf16.mxu0 0
      %798 = vmatpush1.bf16.msra.mxu0 %v789
      %799 = vmatprep.subr.bf16.mxu0 0
      %800 = vmatpush1.bf16.msra.mxu0 0
      %801 = vmatprep.subr.bf16.mxu0 0
      %802 = vmatpush1.bf16.msra.mxu0 0
      %803 = vmatprep.subr.bf16.mxu0 0
      %804 = vmatpush1.bf16.msra.mxu0 0
      %805 = vmatprep.subr.bf16.mxu0 0
      %806 = vmatpush1.bf16.msra.mxu0 0
      %807 = vmatprep.subr.bf16.mxu0 0
      %808 = vmatpush1.bf16.msra.mxu0 0
      %809 = vmatprep.subr.bf16.mxu0 0
      %810 = vmatpush1.bf16.msra.mxu0 0
      %811 = vmatprep.subr.bf16.mxu0 0
      %812 = vmatpush1.bf16.msra.mxu0 0
      %813 = vmatprep.subr.bf16.mxu0 0
      %814 = vmatpush1.bf16.msra.mxu0 0
      %815 = vmatprep.subr.bf16.mxu0 0
      %816 = vmatpush1.bf16.msra.mxu0 0
      %817 = vmatprep.subr.bf16.mxu0 0
      %818 = vmatpush1.bf16.msra.mxu0 0
      %819 = vmatprep.subr.bf16.mxu0 0
      %820 = vmatpush1.bf16.msra.mxu0 0
      %821 = vmatprep.subr.bf16.mxu0 0
      %822 = vmatpush1.bf16.msra.mxu0 0
      %823 = vmatprep.subr.bf16.mxu0 0
      %824 = vmatpush1.bf16.msra.mxu0 0
      %825 = vmatprep.subr.bf16.mxu0 0
      %826 = vmatpush1.bf16.msra.mxu0 0
      %827 = vmatprep.mubr.bf16.mxu0 0
      %828 = vmatmul.mubr.bf16.gmra.mrb[0].mxu0 %v793
      %v829 = vpop.f32.mrb[0].mxu0
      %v830 = vadd.f32 0.0, %v829
      %v831 = vpop.f32.mrb[0].mxu0
      %v832 = vpop.f32.mrb[0].mxu0
      %v833 = vpop.f32.mrb[0].mxu0
      %834 = vdwg.mxu0
      %v835 = vadd.f32 %v772, %v830
      %v836 = vxor.u32 %v835, 2147483648
      %v837 = vmul.f32 %v836, 1.442695
      %v838 = vpow.pop %v837
      %v839 = vadd.f32 %v838, 1.0
      %v840 = vrcp.pop %v839
      %v841 = vmul.f32 1.0, %v840
      %v842 = vtanh.pop %v835
      %844 = vrot.lane.b32.xlu0 %v774, 32
      %v845 = vpop.permute.xlu0 %844
      %v847 = vmul.f32 %v841, %v845
      %849 = vrot.lane.b32.xlu0 %v842, 64
      %v850 = vpop.permute.xlu0 %849
      %v852 = vmul.f32 %v841, %v850
      %854 = vrot.lane.b32.xlu0 %v852, 32
      %v855 = vpop.permute.xlu0 %854
      %v857 = vadd.f32 %v847, %v855
      %v858 = vtanh.pop %v857
      %860 = vrot.lane.b32.xlu0 %v858, 64
      %v861 = vpop.permute.xlu0 %860
      %v863 = vmul.f32 %v841, %v861
      %v864 = vpack.c.bf16 %v758, %v758
      %v865 = vld [vmem:[%s8] sm:$0xf]
      %v866 = vld [vmem:[%s8 + $0x4] sm:$0xf]
      %v867 = vld [vmem:[%s8 + $0x8] sm:$0xf]
      %v868 = vld [vmem:[%s8 + $0xc] sm:$0xf]
      %v869 = vpack.c.bf16 %v863, %v863
      %v870 = vld [vmem:[%s9] sm:$0xf]
      %v871 = vld [vmem:[%s9 + $0x4] sm:$0xf]
      %v872 = vld [vmem:[%s9 + $0x8] sm:$0xf]
      %v873 = vld [vmem:[%s9 + $0xc] sm:$0xf]
      %875 = vrot.lane.b32.xlu0 %v869, 32
      %v876 = vpop.permute.xlu0 %875
      %v881 = vunpack.c.l.b16 %v870
      %v882 = vunpack.c.l.b16 %v871
      %v883 = vunpack.c.l.b16 %v872
      %v884 = vunpack.c.l.b16 %v873
      %v885 = vpack.c.b16 %v882, %v881
      %v886 = vpack.c.b16 %v884, %v883
      %v890 = vsel %vm168, %v876, 0
      %892 = vmatprep.subr.bf16.mxu0 0
      %893 = vmatpush1.bf16.msra.mxu0 %v885
      %894 = vmatprep.subr.bf16.mxu0 0
      %895 = vmatpush1.bf16.msra.mxu0 %v886
      %896 = vmatprep.subr.bf16.mxu0 0
      %897 = vmatpush1.bf16.msra.mxu0 0
      %898 = vmatprep.subr.bf16.mxu0 0
      %899 = vmatpush1.bf16.msra.mxu0 0
      %900 = vmatprep.subr.bf16.mxu0 0
      %901 = vmatpush1.bf16.msra.mxu0 0
      %902 = vmatprep.subr.bf16.mxu0 0
      %903 = vmatpush1.bf16.msra.mxu0 0
      %904 = vmatprep.subr.bf16.mxu0 0
      %905 = vmatpush1.bf16.msra.mxu0 0
      %906 = vmatprep.subr.bf16.mxu0 0
      %907 = vmatpush1.bf16.msra.mxu0 0
      %908 = vmatprep.subr.bf16.mxu0 0
      %909 = vmatpush1.bf16.msra.mxu0 0
      %910 = vmatprep.subr.bf16.mxu0 0
      %911 = vmatpush1.bf16.msra.mxu0 0
      %912 = vmatprep.subr.bf16.mxu0 0
      %913 = vmatpush1.bf16.msra.mxu0 0
      %914 = vmatprep.subr.bf16.mxu0 0
      %915 = vmatpush1.bf16.msra.mxu0 0
      %916 = vmatprep.subr.bf16.mxu0 0
      %917 = vmatpush1.bf16.msra.mxu0 0
      %918 = vmatprep.subr.bf16.mxu0 0
      %919 = vmatpush1.bf16.msra.mxu0 0
      %920 = vmatprep.subr.bf16.mxu0 0
      %921 = vmatpush1.bf16.msra.mxu0 0
      %922 = vmatprep.subr.bf16.mxu0 0
      %923 = vmatpush1.bf16.msra.mxu0 0
      %924 = vmatprep.mubr.bf16.mxu0 0
      %925 = vmatmul.mubr.bf16.gmra.mrb[0].mxu0 %v890
      %v926 = vpop.f32.mrb[0].mxu0
      %v927 = vadd.f32 0.0, %v926
      %v928 = vpop.f32.mrb[0].mxu0
      %v929 = vpop.f32.mrb[0].mxu0
      %v930 = vpop.f32.mrb[0].mxu0
      %931 = vdwg.mxu0
      %933 = vrot.lane.b32.xlu0 %v864, 32
      %v934 = vpop.permute.xlu0 %933
      %v939 = vunpack.c.l.b16 %v865
      %v940 = vunpack.c.l.b16 %v866
      %v941 = vunpack.c.l.b16 %v867
      %v942 = vunpack.c.l.b16 %v868
      %v943 = vpack.c.b16 %v940, %v939
      %v944 = vpack.c.b16 %v942, %v941
      %v948 = vsel %vm168, %v934, 0
      %950 = vmatprep.subr.bf16.mxu0 0
      %951 = vmatpush1.bf16.msra.mxu0 %v943
      %952 = vmatprep.subr.bf16.mxu0 0
      %953 = vmatpush1.bf16.msra.mxu0 %v944
      %954 = vmatprep.subr.bf16.mxu0 0
      %955 = vmatpush1.bf16.msra.mxu0 0
      %956 = vmatprep.subr.bf16.mxu0 0
      %957 = vmatpush1.bf16.msra.mxu0 0
      %958 = vmatprep.subr.bf16.mxu0 0
      %959 = vmatpush1.bf16.msra.mxu0 0
      %960 = vmatprep.subr.bf16.mxu0 0
      %961 = vmatpush1.bf16.msra.mxu0 0
      %962 = vmatprep.subr.bf16.mxu0 0
      %963 = vmatpush1.bf16.msra.mxu0 0
      %964 = vmatprep.subr.bf16.mxu0 0
      %965 = vmatpush1.bf16.msra.mxu0 0
      %966 = vmatprep.subr.bf16.mxu0 0
      %967 = vmatpush1.bf16.msra.mxu0 0
      %968 = vmatprep.subr.bf16.mxu0 0
      %969 = vmatpush1.bf16.msra.mxu0 0
      %970 = vmatprep.subr.bf16.mxu0 0
      %971 = vmatpush1.bf16.msra.mxu0 0
      %972 = vmatprep.subr.bf16.mxu0 0
      %973 = vmatpush1.bf16.msra.mxu0 0
      %974 = vmatprep.subr.bf16.mxu0 0
      %975 = vmatpush1.bf16.msra.mxu0 0
      %976 = vmatprep.subr.bf16.mxu0 0
      %977 = vmatpush1.bf16.msra.mxu0 0
      %978 = vmatprep.subr.bf16.mxu0 0
      %979 = vmatpush1.bf16.msra.mxu0 0
      %980 = vmatprep.subr.bf16.mxu0 0
      %981 = vmatpush1.bf16.msra.mxu0 0
      %982 = vmatprep.mubr.bf16.mxu0 0
      %983 = vmatmul.mubr.bf16.gmra.mrb[0].mxu0 %v948
      %v984 = vpop.f32.mrb[0].mxu0
      %v985 = vadd.f32 %v927, %v984
      %v986 = vpop.f32.mrb[0].mxu0
      %v987 = vpop.f32.mrb[0].mxu0
      %v988 = vpop.f32.mrb[0].mxu0
      %989 = vdwg.mxu0
      %v990 = vld [vmem:[%s10] sm:$0x1]
      %v992 = vlaneseq
      %v993 = vshrl.u32 %v992, 7
      %v994 = vsub.s32 0, %v993
      %v995 = vrot.slane %v990, %v994
      %v997 = vadd.f32 %v985, %v995
      %998 = vst [vmem:[#allocation18] sm:$0xff] %v997
    $region85: #{tpu_custom_call.1} parent=1 // pred_fallthru
      _
    // Predicated region
    $region86: #{tpu_custom_call.1} parent=1 // pred_check
      _
    $region87: #{tpu_custom_call.1} parent=1 // pred_check_branch
      %1000 = sbr.rel (0) target = $region89
    $region88: #{tpu_custom_call.1} parent=1 // pred_region
      %s1002 = ssub.s32 128, 128
      %1003 = vsyncadd [#allocation6], %s1002
      %s1005 = sshll.u32 [#allocation18], 4
      %s1006 = int_to_ptr.vmem [resolvable:$true] %s1005
      %1008 = dma.vmem_to_hbm [thread:$0]  %s1006, 128, %s11, [#allocation6]
    $region89: #{tpu_custom_call.1} parent=1 // pred_fallthru
      _
    // Predicated region
    $region90: #{tpu_custom_call.1} parent=1 // pred_check
      _
    $region91: #{tpu_custom_call.1} parent=1 // pred_check_branch
      %1010 = sbr.rel (0) target = $region93
    $region92: #{tpu_custom_call.1} parent=1 // pred_region
      %1011 = dma.done [#allocation6], 128
    $region93: #{tpu_custom_call.1} parent=1 // pred_fallthru
      _
    %1012 = vsyncpa [#allocation5], 1
    %1013 = vsyncpa [#allocation8], 1
    %1014 = vsyncpa [#allocation11], 1
    %1015 = vsyncpa [#allocation14], 1
    %1016 = vsyncpa [#allocation17], 1
    %1017 = vsyncpa [#allocation6], 1

</llo_original>
